<compile_context>
chip_gen: v6e
topology: v6e:2x2x1
jax: 0.10.0
libtpu: 0.0.40
codegen_flags: <defaults>
</compile_context>

<pallas_src>
import jax
import jax.numpy as jnp
from jax.experimental import pallas as pl
from jax.experimental.pallas import tpu as pltpu

LEAKY_SLOPE = 0.01            # nn.LeakyReLU default
IN_EPS = 1e-5                 # nn.InstanceNorm2d default (affine=False)
FEAT_DTYPE = jnp.bfloat16     # MXU operand dtype for the conv matmuls


# --------------------------------------------------------------------------
# Host-side layout helpers (run once, on tiny arrays)
# --------------------------------------------------------------------------

def nested_pixel_order(H, W, rates):
    """Pixel storage order required at the input of the DownSample stack.

    Nested tap-major ordering: for every layer with kernel==stride==k, the k*k
    taps of all its output pixels form k*k contiguous row-slabs, and the
    layer's output (written in output-pixel order) is already in the next
    layer's required input order.  Returns flat indices into row-major (H, W).
    """
    h, w = H, W
    for k in rates:
        assert h % k == 0 and w % k == 0, "spatial dims must divide the rates"
        h //= k
        w //= k
    order = [(ho, wo) for ho in range(h) for wo in range(w)]       # final grid
    for k in reversed(rates):
        order = [(ho * k + kh, wo * k + kw)
                 for kh in range(k) for kw in range(k)
                 for (ho, wo) in order]
    return jnp.asarray([hh * W + ww for (hh, ww) in order], dtype=jnp.int32)


def _padded_vmem_bytes(shape, dtype):
    """Bytes a buffer really occupies in VMEM (sublane/lane padding included)."""
    itemsize = jnp.dtype(dtype).itemsize
    sublane = {4: 8, 2: 16, 1: 32}.get(itemsize, 8)
    if len(shape) == 1:
        rows, cols, lead = 1, shape[0], 1
    else:
        rows, cols = shape[-2], shape[-1]
        lead = 1
        for d in shape[:-2]:
            lead *= d
    r = -(-rows // sublane) * sublane
    c = -(-cols // 128) * 128
    return lead * r * c * itemsize


# --------------------------------------------------------------------------
# Fused Pallas forward
# --------------------------------------------------------------------------

def build_cropping_forward(N, H, W, cin, chan, rates, batches_per_step=None):
    L = len(rates)
    nb = N if batches_per_step is None else batches_per_step
    assert N % nb == 0, "batches_per_step must divide N"
    G = N // nb                                   # grid steps (v7x: use >=2)

    dims = [(H, W)]
    for k in rates:
        assert dims[-1][0] % k == 0 and dims[-1][1] % k == 0
        dims.append((dims[-1][0] // k, dims[-1][1] // k))
    P_out = [dims[i + 1][0] * dims[i + 1][1] for i in range(L)]  # out pixels/layer
    kk = [k * k for k in rates]
    HW = H * W
    P_last = P_out[-1]
    Hl, Wl = dims[-1]

    def kernel(*refs):
        x_ref, wbb_ref, bbb_ref = refs[0], refs[1], refs[2]
        layer_w = [refs[3 + 2 * i] for i in range(L)]
        layer_b = [refs[4 + 2 * i] for i in range(L)]
        o_ref = refs[3 + 2 * L]
        scratch = list(refs[4 + 2 * L:])

        # ---- backbone stand-in: 1x1 conv (cin -> chan) + LeakyReLU.
        # cin is tiny, so broadcast-FMAs on the VPU (a K=cin MXU matmul would
        # leave the systolic array idle).  All elementwise math stays in f32.
        x = x_ref[...]                                   # (nb*HW, cin) f32
        z = x[:, 0:1] * wbb_ref[0:1, :]
        for c in range(1, cin):
            z = z + x[:, c:c + 1] * wbb_ref[c:c + 1, :]
        z = z + bbb_ref[...]
        z = jnp.where(z >= 0.0, z, LEAKY_SLOPE * z)      # (nb*HW, chan) f32

        # Scatter the backbone output into layer 0's lane-concatenated tap
        # layout: row p = output pixel p, columns [t*chan:(t+1)*chan] = tap t.
        P0 = P_out[0]
        for b in range(nb):
            for t in range(kk[0]):
                slab = z[b * HW + t * P0: b * HW + (t + 1) * P0, :]
                scratch[0][b * P0:(b + 1) * P0,
                           t * chan:(t + 1) * chan] = slab.astype(FEAT_DTYPE)

        # ---- DownSample stack: each conv = ONE K = k*k*chan MXU contraction.
        for i in range(L):
            P = P_out[i]
            fin = scratch[i][...]                        # (nb*P, kk[i]*chan) bf16
            if i < L - 1:
                zc = jnp.dot(fin, layer_w[i][...],
                             preferred_element_type=jnp.float32)
                zc = zc + layer_b[i][...]                # (nb*P, chan) f32
                Pn = P_out[i + 1]
                inv_p = 1.0 / float(P)
                for b in range(nb):                      # InstanceNorm per batch
                    zb = zc[b * P:(b + 1) * P, :]
                    m = jnp.sum(zb, axis=0, keepdims=True) * inv_p
                    d = zb - m                           # two-pass (mean-shifted)
                    var = jnp.sum(d * d, axis=0, keepdims=True) * inv_p
                    yb = d * jax.lax.rsqrt(var + IN_EPS)
                    yb = jnp.where(yb >= 0.0, yb, LEAKY_SLOPE * yb)
                    yb = yb.astype(FEAT_DTYPE)           # (P, chan)
                    # write straight into the next layer's tap-column slabs
                    for t in range(kk[i + 1]):
                        scratch[i + 1][b * Pn:(b + 1) * Pn,
                                       t * chan:(t + 1) * chan] = \
                            yb[t * Pn:(t + 1) * Pn, :]
            else:
                # last layer (Cout=1): lane-dense (1, nb*P_last) row
                row = jnp.einsum('oc,pc->op', layer_w[i][...], fin,
                                 preferred_element_type=jnp.float32)
                row = row + layer_b[i][...]              # (1,1) broadcast
                o_ref[...] = jnp.tanh(row)               # (1, nb*P_last)

    # ---- specs ------------------------------------------------------------
    in_specs = [
        pl.BlockSpec((pl.Squeezed(), nb * HW, cin), lambda g: (g, 0, 0)),  # x
        pl.BlockSpec((cin, chan), lambda g: (0, 0)),                        # bb W
        pl.BlockSpec((1, chan), lambda g: (0, 0)),                          # bb b
    ]
    for i in range(L):
        if i < L - 1:
            in_specs.append(pl.BlockSpec((kk[i] * chan, chan), lambda g: (0, 0)))
            in_specs.append(pl.BlockSpec((1, chan), lambda g: (0, 0)))
        else:
            in_specs.append(pl.BlockSpec((1, kk[i] * chan), lambda g: (0, 0)))
            in_specs.append(pl.BlockSpec((1, 1), lambda g: (0, 0)))

    out_spec = pl.BlockSpec((pl.Squeezed(), 1, nb * P_last), lambda g: (g, 0, 0))
    scratch_shapes = [pltpu.VMEM((nb * P_out[i], kk[i] * chan), FEAT_DTYPE)
                      for i in range(L)]

    # ---- VMEM budget from PADDED tile sizes (x2 for pipelining buffers) ----
    buf = 2 * _padded_vmem_bytes((nb * HW, cin), jnp.float32)
    buf += 2 * _padded_vmem_bytes((cin, chan), jnp.float32)
    buf += 2 * _padded_vmem_bytes((1, chan), jnp.float32)
    for i in range(L):
        if i < L - 1:
            buf += 2 * _padded_vmem_bytes((kk[i] * chan, chan), FEAT_DTYPE)
            buf += 2 * _padded_vmem_bytes((1, chan), jnp.float32)
        else:
            buf += 2 * _padded_vmem_bytes((1, kk[i] * chan), FEAT_DTYPE)
            buf += 2 * _padded_vmem_bytes((1, 1), jnp.float32)
    buf += 2 * _padded_vmem_bytes((1, nb * P_last), jnp.float32)
    for i in range(L):
        buf += _padded_vmem_bytes((nb * P_out[i], kk[i] * chan), FEAT_DTYPE)
    # generous headroom; still far under v7x's 64 MiB physical VMEM here.
    vmem_limit = int(min(max(2 * buf, 8 * 1024 * 1024), 100 * 1024 * 1024))
    # TODO(synk): for large H*W add a trailing "arbitrary" spatial grid axis and
    # size the tile against ~48 MiB (v7x) / ~100 MiB (v6e) using padded bytes.

    # ---- advisory cost estimate --------------------------------------------
    flops = N * HW * cin * chan * 2
    for i in range(L):
        cout = chan if i < L - 1 else 1
        flops += N * P_out[i] * (kk[i] * chan) * cout * 2
    transcendentals = N * (P_last + chan * (L - 1))
    bytes_accessed = 4 * N * HW * cin + 4 * N * P_last + 4 * (cin * chan + chan)
    for i in range(L):
        cout = chan if i < L - 1 else 1
        bytes_accessed += 2 * kk[i] * chan * cout + 4 * cout

    call = pl.pallas_call(
        kernel,
        out_shape=jax.ShapeDtypeStruct((G, 1, nb * P_last), jnp.float32),
        grid=(G,),
        in_specs=in_specs,
        out_specs=out_spec,
        scratch_shapes=scratch_shapes,
        compiler_params=pltpu.CompilerParams(
            dimension_semantics=("parallel",),
            vmem_limit_bytes=vmem_limit,
        ),
        cost_estimate=pl.CostEstimate(flops=flops,
                                      transcendentals=transcendentals,
                                      bytes_accessed=bytes_accessed),
    )

    perm = nested_pixel_order(H, W, rates)

    def forward(x_nchw, packed):
        n, c, h, w = x_nchw.shape
        # single tiny gather on the model input; everything else stays in VMEM.
        # TODO(synk): for large H*W fold this gather into the kernel (scalar-
        # prefetched pl.Element row gather) to avoid the extra HBM round trip.
        x_rows = jnp.transpose(x_nchw, (0, 2, 3, 1)).reshape(n, h * w, c)
        x_rows = jnp.take(x_rows, perm, axis=1).reshape(G, nb * h * w, c)
        args = [x_rows, packed["bb_w"], packed["bb_b"]]
        for i in range(L):
            args += [packed[f"ds{i}_w"], packed[f"ds{i}_b"]]
        y = call(*args)                                  # (G, 1, nb*P_last)
        y = y.reshape(n, 1, Hl, Wl)
        # torch parity: unsqueeze(squeeze(...), 0) -- torch.squeeze drops ALL
        # size-1 dims (shape hazard for N==1, kept for exact parity).
        return jnp.expand_dims(jnp.squeeze(y), axis=0)

    return forward


# --------------------------------------------------------------------------
# Parameters (PyTorch Conv2d layout) + packing for the kernel
# --------------------------------------------------------------------------

def init_raw_params(key, cin, chan, rates):
    raw = {}
    k0, k1, key = jax.random.split(key, 3)
    raw["bb_w"] = 0.1 * jax.random.normal(k0, (chan, cin, 1, 1), jnp.float32)
    raw["bb_b"] = 0.05 * jax.random.normal(k1, (chan,), jnp.float32)
    L = len(rates)
    for i, k in enumerate(rates):
        cout = 1 if i == L - 1 else chan
        kw_key, kb_key, key = jax.random.split(key, 3)
        raw[f"ds{i}_w"] = 0.05 * jax.random.normal(kw_key, (cout, chan, k, k),
                                                   jnp.float32)
        raw[f"ds{i}_b"] = 0.02 * jax.random.normal(kb_key, (cout,), jnp.float32)
    return raw


def pack_params(raw, cin, chan, rates):
    L = len(rates)
    packed = {
        "bb_w": raw["bb_w"].reshape(chan, cin).T.astype(jnp.float32),  # (cin, chan)
        "bb_b": raw["bb_b"].reshape(1, chan).astype(jnp.float32),
    }
    for i, k in enumerate(rates):
        w, b = raw[f"ds{i}_w"], raw[f"ds{i}_b"]
        cout = w.shape[0]
        # (O, I, kh, kw) -> (kh, kw, I, O) -> (k*k*I, O): tap-stacked K matrix
        w_stk = jnp.transpose(w, (2, 3, 1, 0)).reshape(k * k * chan, cout)
        if i < L - 1:
            packed[f"ds{i}_w"] = w_stk.astype(FEAT_DTYPE)          # (k*k*chan, chan)
            packed[f"ds{i}_b"] = b.reshape(1, chan).astype(jnp.float32)
        else:
            packed[f"ds{i}_w"] = w_stk.T.astype(FEAT_DTYPE)        # (1, k*k*chan)
            packed[f"ds{i}_b"] = b.reshape(1, 1).astype(jnp.float32)
    return packed


# --------------------------------------------------------------------------
# Pure-JAX reference (same semantics, NCHW, f32 XLA convs) for validation
# --------------------------------------------------------------------------

def reference_forward(x_nchw, raw, rates):
    prec = jax.lax.Precision.HIGHEST
    y = jax.lax.conv_general_dilated(
        x_nchw, raw["bb_w"], (1, 1), "VALID",
        dimension_numbers=("NCHW", "OIHW", "NCHW"), precision=prec)
    y = y + raw["bb_b"][None, :, None, None]
    y = jnp.where(y >= 0.0, y, LEAKY_SLOPE * y)
    L = len(rates)
    for i, k in enumerate(rates):
        y = jax.lax.conv_general_dilated(
            y, raw[f"ds{i}_w"], (k, k), "VALID",
            dimension_numbers=("NCHW", "OIHW", "NCHW"), precision=prec)
        y = y + raw[f"ds{i}_b"][None, :, None, None]
        if i < L - 1:
            mean = jnp.mean(y, axis=(2, 3), keepdims=True)
            var = jnp.mean((y - mean) ** 2, axis=(2, 3), keepdims=True)
            y = (y - mean) * jax.lax.rsqrt(var + IN_EPS)
            y = jnp.where(y >= 0.0, y, LEAKY_SLOPE * y)
        else:
            y = jnp.tanh(y)
    return jnp.expand_dims(jnp.squeeze(y), axis=0)


# --------------------------------------------------------------------------

if __name__ == "__main__":
    # cfg['model']['list_downsample_rate'] = [2, 2]; hidden_activation='LeackyReLU'
    list_downsample_rate = [2, 2]
    N, CIN, H, W = 2, 3, 16, 16
    CHAN = 32                      # backbone classes=32, DownSample channel_num=32

    key = jax.random.PRNGKey(0)
    k_in, k_par = jax.random.split(key)
    x = jax.random.normal(k_in, (N, CIN, H, W), jnp.float32)    # NCHW, like PyTorch

    raw = init_raw_params(k_par, CIN, CHAN, list_downsample_rate)
    packed = pack_params(raw, CIN, CHAN, list_downsample_rate)

    forward = jax.jit(build_cropping_forward(N, H, W, CIN, CHAN,
                                             list_downsample_rate))
    y = jax.block_until_ready(forward(x, packed))

    ds = 1
    for k in list_downsample_rate:
        ds *= k
    # Expected: (2,1,4,4) -> squeeze -> (2,4,4) -> unsqueeze(0) -> (1,2,4,4)
    assert y.shape == (1, N, H // ds, W // ds), y.shape
    assert bool(jnp.all(jnp.isfinite(y)))

    # correctness vs a plain-JAX/XLA f32 reference (tolerance covers bf16 MXU
    # operands + InstanceNorm amplification of small conv rounding errors)
    y_ref = jax.block_until_ready(reference_forward(x, raw, list_downsample_rate))
    assert y_ref.shape == y.shape, (y.shape, y_ref.shape)
    max_err = float(jnp.max(jnp.abs(y - y_ref)))
    assert max_err < 5e-2, f"max abs error vs reference: {max_err}"

    print("KERNEL_OK")
</pallas_src>

<mosaic_0001>
module attributes {stable_mosaic.version = 11 : i64} {
  func.func @kernel(%arg0: i32, %arg1: memref<1x512x3xf32, #tpu.memory_space<vmem>>, %arg2: memref<3x32xf32, #tpu.memory_space<vmem>>, %arg3: memref<1x32xf32, #tpu.memory_space<vmem>>, %arg4: memref<128x32xbf16, #tpu.memory_space<vmem>>, %arg5: memref<1x32xf32, #tpu.memory_space<vmem>>, %arg6: memref<1x128xbf16, #tpu.memory_space<vmem>>, %arg7: memref<1x1xf32, #tpu.memory_space<vmem>>, %arg8: memref<1x1x32xf32, #tpu.memory_space<vmem>>, %arg9: memref<128x128xbf16, #tpu.memory_space<vmem>>, %arg10: memref<32x128xbf16, #tpu.memory_space<vmem>>) attributes {dimension_semantics = [#tpu.dimension_semantics<parallel>], iteration_bounds = array<i64: 1>, scalar_prefetch = 0 : i64, scratch_operands = 2 : i64, tpu.core_type = #tpu.core_type<tc>, window_params = [{transform_indices = @transform_0, window_bounds = array<i64: 1, 512, 3>}, {pipeline_mode = #tpu.pipeline_mode<synchronous>, transform_indices = @transform_1, window_bounds = array<i64: 3, 32>}, {pipeline_mode = #tpu.pipeline_mode<synchronous>, transform_indices = @transform_2, window_bounds = array<i64: 1, 32>}, {pipeline_mode = #tpu.pipeline_mode<synchronous>, transform_indices = @transform_3, window_bounds = array<i64: 128, 32>}, {pipeline_mode = #tpu.pipeline_mode<synchronous>, transform_indices = @transform_4, window_bounds = array<i64: 1, 32>}, {pipeline_mode = #tpu.pipeline_mode<synchronous>, transform_indices = @transform_5, window_bounds = array<i64: 1, 128>}, {pipeline_mode = #tpu.pipeline_mode<synchronous>, transform_indices = @transform_6, window_bounds = array<i64: 1, 1>}, {transform_indices = @transform_7, window_bounds = array<i64: 1, 1, 32>}]} {
    %c0 = arith.constant 0 : index
    %c0_0 = arith.constant 0 : index
    %c0_1 = arith.constant 0 : index
    %0 = vector.load %arg1[%c0, %c0_0, %c0_1] : memref<1x512x3xf32, #tpu.memory_space<vmem>>, vector<1x512x3xf32>
    %1 = vector.shape_cast %0 : vector<1x512x3xf32> to vector<512x3xf32>
    %2 = vector.extract_strided_slice %1 {offsets = [0, 0], sizes = [512, 1], strides = [1, 1]} : vector<512x3xf32> to vector<512x1xf32>
    %c0_2 = arith.constant 0 : index
    %c0_3 = arith.constant 0 : index
    %3 = vector.load %arg2[%c0_2, %c0_3] : memref<3x32xf32, #tpu.memory_space<vmem>>, vector<1x32xf32>
    %4 = vector.broadcast %2 : vector<512x1xf32> to vector<512x32xf32>
    %5 = vector.broadcast %3 : vector<1x32xf32> to vector<512x32xf32>
    %6 = arith.mulf %4, %5 : vector<512x32xf32>
    %7 = vector.extract_strided_slice %1 {offsets = [0, 1], sizes = [512, 1], strides = [1, 1]} : vector<512x3xf32> to vector<512x1xf32>
    %c1 = arith.constant 1 : index
    %c0_4 = arith.constant 0 : index
    %8 = vector.load %arg2[%c1, %c0_4] : memref<3x32xf32, #tpu.memory_space<vmem>>, vector<1x32xf32>
    %9 = vector.broadcast %7 : vector<512x1xf32> to vector<512x32xf32>
    %10 = vector.broadcast %8 : vector<1x32xf32> to vector<512x32xf32>
    %11 = arith.mulf %9, %10 : vector<512x32xf32>
    %12 = arith.addf %6, %11 : vector<512x32xf32>
    %13 = vector.extract_strided_slice %1 {offsets = [0, 2], sizes = [512, 1], strides = [1, 1]} : vector<512x3xf32> to vector<512x1xf32>
    %c2 = arith.constant 2 : index
    %c0_5 = arith.constant 0 : index
    %14 = vector.load %arg2[%c2, %c0_5] : memref<3x32xf32, #tpu.memory_space<vmem>>, vector<1x32xf32>
    %15 = vector.broadcast %13 : vector<512x1xf32> to vector<512x32xf32>
    %16 = vector.broadcast %14 : vector<1x32xf32> to vector<512x32xf32>
    %17 = arith.mulf %15, %16 : vector<512x32xf32>
    %18 = arith.addf %12, %17 : vector<512x32xf32>
    %c0_6 = arith.constant 0 : index
    %c0_7 = arith.constant 0 : index
    %19 = vector.load %arg3[%c0_6, %c0_7] : memref<1x32xf32, #tpu.memory_space<vmem>>, vector<1x32xf32>
    %20 = vector.broadcast %19 : vector<1x32xf32> to vector<512x32xf32>
    %21 = arith.addf %18, %20 : vector<512x32xf32>
    %cst = arith.constant 0.000000e+00 : f32
    %22 = vector.broadcast %cst : f32 to vector<512x32xf32>
    %23 = arith.cmpf oge, %21, %22 : vector<512x32xf32>
    %cst_8 = arith.constant 0.00999999977 : f32
    %24 = vector.broadcast %cst_8 : f32 to vector<512x32xf32>
    %25 = arith.mulf %24, %21 : vector<512x32xf32>
    %26 = arith.select %23, %21, %25 : vector<512x32xi1>, vector<512x32xf32>
    %27 = vector.extract_strided_slice %26 {offsets = [0, 0], sizes = [64, 32], strides = [1, 1]} : vector<512x32xf32> to vector<64x32xf32>
    %28 = arith.truncf %27 : vector<64x32xf32> to vector<64x32xbf16>
    %c0_9 = arith.constant 0 : index
    %c0_10 = arith.constant 0 : index
    %29 = vector.load %arg9[%c0_9, %c0_10] : memref<128x128xbf16, #tpu.memory_space<vmem>>, vector<64x32xbf16>
    tpu.vector_store %arg9[%c0_9, %c0_10], %28 {strides = array<i32>} : memref<128x128xbf16, #tpu.memory_space<vmem>>, vector<64x32xbf16>,
    %30 = vector.extract_strided_slice %26 {offsets = [64, 0], sizes = [64, 32], strides = [1, 1]} : vector<512x32xf32> to vector<64x32xf32>
    %31 = arith.truncf %30 : vector<64x32xf32> to vector<64x32xbf16>
    %c0_11 = arith.constant 0 : index
    %c32 = arith.constant 32 : index
    %32 = vector.load %arg9[%c0_11, %c32] : memref<128x128xbf16, #tpu.memory_space<vmem>>, vector<64x32xbf16>
    tpu.vector_store %arg9[%c0_11, %c32], %31 {strides = array<i32>} : memref<128x128xbf16, #tpu.memory_space<vmem>>, vector<64x32xbf16>,
    %33 = vector.extract_strided_slice %26 {offsets = [128, 0], sizes = [64, 32], strides = [1, 1]} : vector<512x32xf32> to vector<64x32xf32>
    %34 = arith.truncf %33 : vector<64x32xf32> to vector<64x32xbf16>
    %c0_12 = arith.constant 0 : index
    %c64 = arith.constant 64 : index
    %35 = vector.load %arg9[%c0_12, %c64] : memref<128x128xbf16, #tpu.memory_space<vmem>>, vector<64x32xbf16>
    tpu.vector_store %arg9[%c0_12, %c64], %34 {strides = array<i32>} : memref<128x128xbf16, #tpu.memory_space<vmem>>, vector<64x32xbf16>,
    %36 = vector.extract_strided_slice %26 {offsets = [192, 0], sizes = [64, 32], strides = [1, 1]} : vector<512x32xf32> to vector<64x32xf32>
    %37 = arith.truncf %36 : vector<64x32xf32> to vector<64x32xbf16>
    %c0_13 = arith.constant 0 : index
    %c96 = arith.constant 96 : index
    %38 = vector.load %arg9[%c0_13, %c96] : memref<128x128xbf16, #tpu.memory_space<vmem>>, vector<64x32xbf16>
    tpu.vector_store %arg9[%c0_13, %c96], %37 {strides = array<i32>} : memref<128x128xbf16, #tpu.memory_space<vmem>>, vector<64x32xbf16>,
    %39 = vector.extract_strided_slice %26 {offsets = [256, 0], sizes = [64, 32], strides = [1, 1]} : vector<512x32xf32> to vector<64x32xf32>
    %40 = arith.truncf %39 : vector<64x32xf32> to vector<64x32xbf16>
    %c64_14 = arith.constant 64 : index
    %c0_15 = arith.constant 0 : index
    %41 = vector.load %arg9[%c64_14, %c0_15] : memref<128x128xbf16, #tpu.memory_space<vmem>>, vector<64x32xbf16>
    tpu.vector_store %arg9[%c64_14, %c0_15], %40 {strides = array<i32>} : memref<128x128xbf16, #tpu.memory_space<vmem>>, vector<64x32xbf16>,
    %42 = vector.extract_strided_slice %26 {offsets = [320, 0], sizes = [64, 32], strides = [1, 1]} : vector<512x32xf32> to vector<64x32xf32>
    %43 = arith.truncf %42 : vector<64x32xf32> to vector<64x32xbf16>
    %c64_16 = arith.constant 64 : index
    %c32_17 = arith.constant 32 : index
    %44 = vector.load %arg9[%c64_16, %c32_17] : memref<128x128xbf16, #tpu.memory_space<vmem>>, vector<64x32xbf16>
    tpu.vector_store %arg9[%c64_16, %c32_17], %43 {strides = array<i32>} : memref<128x128xbf16, #tpu.memory_space<vmem>>, vector<64x32xbf16>,
    %45 = vector.extract_strided_slice %26 {offsets = [384, 0], sizes = [64, 32], strides = [1, 1]} : vector<512x32xf32> to vector<64x32xf32>
    %46 = arith.truncf %45 : vector<64x32xf32> to vector<64x32xbf16>
    %c64_18 = arith.constant 64 : index
    %c64_19 = arith.constant 64 : index
    %47 = vector.load %arg9[%c64_18, %c64_19] : memref<128x128xbf16, #tpu.memory_space<vmem>>, vector<64x32xbf16>
    tpu.vector_store %arg9[%c64_18, %c64_19], %46 {strides = array<i32>} : memref<128x128xbf16, #tpu.memory_space<vmem>>, vector<64x32xbf16>,
    %48 = vector.extract_strided_slice %26 {offsets = [448, 0], sizes = [64, 32], strides = [1, 1]} : vector<512x32xf32> to vector<64x32xf32>
    %49 = arith.truncf %48 : vector<64x32xf32> to vector<64x32xbf16>
    %c64_20 = arith.constant 64 : index
    %c96_21 = arith.constant 96 : index
    %50 = vector.load %arg9[%c64_20, %c96_21] : memref<128x128xbf16, #tpu.memory_space<vmem>>, vector<64x32xbf16>
    tpu.vector_store %arg9[%c64_20, %c96_21], %49 {strides = array<i32>} : memref<128x128xbf16, #tpu.memory_space<vmem>>, vector<64x32xbf16>,
    %c0_22 = arith.constant 0 : index
    %c0_23 = arith.constant 0 : index
    %51 = vector.load %arg9[%c0_22, %c0_23] : memref<128x128xbf16, #tpu.memory_space<vmem>>, vector<128x128xbf16>
    %c0_24 = arith.constant 0 : index
    %c0_25 = arith.constant 0 : index
    %52 = vector.load %arg4[%c0_24, %c0_25] : memref<128x32xbf16, #tpu.memory_space<vmem>>, vector<128x32xbf16>
    %cst_26 = arith.constant dense<0.000000e+00> : vector<128x32xf32>
    %53 = tpu.matmul %51, %52, %cst_26 {dimension_numbers = #tpu.dot_dimension_numbers<[1], [0], [0], [1], [0, 0, 1, 1], [], []>} : vector<128x128xbf16>, vector<128x32xbf16>, vector<128x32xf32> -> vector<128x32xf32>
    %c0_27 = arith.constant 0 : index
    %c0_28 = arith.constant 0 : index
    %54 = vector.load %arg5[%c0_27, %c0_28] : memref<1x32xf32, #tpu.memory_space<vmem>>, vector<1x32xf32>
    %55 = vector.broadcast %54 : vector<1x32xf32> to vector<128x32xf32>
    %56 = arith.addf %53, %55 : vector<128x32xf32>
    %57 = vector.extract_strided_slice %56 {offsets = [0, 0], sizes = [64, 32], strides = [1, 1]} : vector<128x32xf32> to vector<64x32xf32>
    %cst_29 = arith.constant dense<0.000000e+00> : vector<32xf32>
    %58 = vector.multi_reduction <add>, %57, %cst_29 [0] : vector<64x32xf32> to vector<32xf32>
    %59 = vector.shape_cast %58 : vector<32xf32> to vector<1x32xf32>
    %cst_30 = arith.constant 1.562500e-02 : f32
    %60 = vector.broadcast %cst_30 : f32 to vector<1x32xf32>
    %61 = arith.mulf %59, %60 : vector<1x32xf32>
    %62 = vector.broadcast %61 : vector<1x32xf32> to vector<64x32xf32>
    %63 = arith.subf %57, %62 : vector<64x32xf32>
    %64 = arith.mulf %63, %63 : vector<64x32xf32>
    %cst_31 = arith.constant dense<0.000000e+00> : vector<32xf32>
    %65 = vector.multi_reduction <add>, %64, %cst_31 [0] : vector<64x32xf32> to vector<32xf32>
    %66 = vector.shape_cast %65 : vector<32xf32> to vector<1x32xf32>
    %cst_32 = arith.constant 1.562500e-02 : f32
    %67 = vector.broadcast %cst_32 : f32 to vector<1x32xf32>
    %68 = arith.mulf %66, %67 : vector<1x32xf32>
    %cst_33 = arith.constant 9.99999974E-6 : f32
    %69 = vector.broadcast %cst_33 : f32 to vector<1x32xf32>
    %70 = arith.addf %68, %69 : vector<1x32xf32>
    %71 = math.rsqrt %70 : vector<1x32xf32>
    %72 = vector.broadcast %71 : vector<1x32xf32> to vector<64x32xf32>
    %73 = arith.mulf %63, %72 : vector<64x32xf32>
    %cst_34 = arith.constant 0.000000e+00 : f32
    %74 = vector.broadcast %cst_34 : f32 to vector<64x32xf32>
    %75 = arith.cmpf oge, %73, %74 : vector<64x32xf32>
    %cst_35 = arith.constant 0.00999999977 : f32
    %76 = vector.broadcast %cst_35 : f32 to vector<64x32xf32>
    %77 = arith.mulf %76, %73 : vector<64x32xf32>
    %78 = arith.select %75, %73, %77 : vector<64x32xi1>, vector<64x32xf32>
    %79 = arith.truncf %78 : vector<64x32xf32> to vector<64x32xbf16>
    %80 = vector.extract_strided_slice %79 {offsets = [0, 0], sizes = [16, 32], strides = [1, 1]} : vector<64x32xbf16> to vector<16x32xbf16>
    %c0_36 = arith.constant 0 : index
    %c0_37 = arith.constant 0 : index
    %81 = vector.load %arg10[%c0_36, %c0_37] : memref<32x128xbf16, #tpu.memory_space<vmem>>, vector<16x32xbf16>
    tpu.vector_store %arg10[%c0_36, %c0_37], %80 {strides = array<i32>} : memref<32x128xbf16, #tpu.memory_space<vmem>>, vector<16x32xbf16>,
    %82 = vector.extract_strided_slice %79 {offsets = [16, 0], sizes = [16, 32], strides = [1, 1]} : vector<64x32xbf16> to vector<16x32xbf16>
    %c0_38 = arith.constant 0 : index
    %c32_39 = arith.constant 32 : index
    %83 = vector.load %arg10[%c0_38, %c32_39] : memref<32x128xbf16, #tpu.memory_space<vmem>>, vector<16x32xbf16>
    tpu.vector_store %arg10[%c0_38, %c32_39], %82 {strides = array<i32>} : memref<32x128xbf16, #tpu.memory_space<vmem>>, vector<16x32xbf16>,
    %84 = vector.extract_strided_slice %79 {offsets = [32, 0], sizes = [16, 32], strides = [1, 1]} : vector<64x32xbf16> to vector<16x32xbf16>
    %c0_40 = arith.constant 0 : index
    %c64_41 = arith.constant 64 : index
    %85 = vector.load %arg10[%c0_40, %c64_41] : memref<32x128xbf16, #tpu.memory_space<vmem>>, vector<16x32xbf16>
    tpu.vector_store %arg10[%c0_40, %c64_41], %84 {strides = array<i32>} : memref<32x128xbf16, #tpu.memory_space<vmem>>, vector<16x32xbf16>,
    %86 = vector.extract_strided_slice %79 {offsets = [48, 0], sizes = [16, 32], strides = [1, 1]} : vector<64x32xbf16> to vector<16x32xbf16>
    %c0_42 = arith.constant 0 : index
    %c96_43 = arith.constant 96 : index
    %87 = vector.load %arg10[%c0_42, %c96_43] : memref<32x128xbf16, #tpu.memory_space<vmem>>, vector<16x32xbf16>
    tpu.vector_store %arg10[%c0_42, %c96_43], %86 {strides = array<i32>} : memref<32x128xbf16, #tpu.memory_space<vmem>>, vector<16x32xbf16>,
    %88 = vector.extract_strided_slice %56 {offsets = [64, 0], sizes = [64, 32], strides = [1, 1]} : vector<128x32xf32> to vector<64x32xf32>
    %cst_44 = arith.constant dense<0.000000e+00> : vector<32xf32>
    %89 = vector.multi_reduction <add>, %88, %cst_44 [0] : vector<64x32xf32> to vector<32xf32>
    %90 = vector.shape_cast %89 : vector<32xf32> to vector<1x32xf32>
    %cst_45 = arith.constant 1.562500e-02 : f32
    %91 = vector.broadcast %cst_45 : f32 to vector<1x32xf32>
    %92 = arith.mulf %90, %91 : vector<1x32xf32>
    %93 = vector.broadcast %92 : vector<1x32xf32> to vector<64x32xf32>
    %94 = arith.subf %88, %93 : vector<64x32xf32>
    %95 = arith.mulf %94, %94 : vector<64x32xf32>
    %cst_46 = arith.constant dense<0.000000e+00> : vector<32xf32>
    %96 = vector.multi_reduction <add>, %95, %cst_46 [0] : vector<64x32xf32> to vector<32xf32>
    %97 = vector.shape_cast %96 : vector<32xf32> to vector<1x32xf32>
    %cst_47 = arith.constant 1.562500e-02 : f32
    %98 = vector.broadcast %cst_47 : f32 to vector<1x32xf32>
    %99 = arith.mulf %97, %98 : vector<1x32xf32>
    %cst_48 = arith.constant 9.99999974E-6 : f32
    %100 = vector.broadcast %cst_48 : f32 to vector<1x32xf32>
    %101 = arith.addf %99, %100 : vector<1x32xf32>
    %102 = math.rsqrt %101 : vector<1x32xf32>
    %103 = vector.broadcast %102 : vector<1x32xf32> to vector<64x32xf32>
    %104 = arith.mulf %94, %103 : vector<64x32xf32>
    %cst_49 = arith.constant 0.000000e+00 : f32
    %105 = vector.broadcast %cst_49 : f32 to vector<64x32xf32>
    %106 = arith.cmpf oge, %104, %105 : vector<64x32xf32>
    %cst_50 = arith.constant 0.00999999977 : f32
    %107 = vector.broadcast %cst_50 : f32 to vector<64x32xf32>
    %108 = arith.mulf %107, %104 : vector<64x32xf32>
    %109 = arith.select %106, %104, %108 : vector<64x32xi1>, vector<64x32xf32>
    %110 = arith.truncf %109 : vector<64x32xf32> to vector<64x32xbf16>
    %111 = vector.extract_strided_slice %110 {offsets = [0, 0], sizes = [16, 32], strides = [1, 1]} : vector<64x32xbf16> to vector<16x32xbf16>
    %c16 = arith.constant 16 : index
    %c0_51 = arith.constant 0 : index
    %112 = vector.load %arg10[%c16, %c0_51] : memref<32x128xbf16, #tpu.memory_space<vmem>>, vector<16x32xbf16>
    tpu.vector_store %arg10[%c16, %c0_51], %111 {strides = array<i32>} : memref<32x128xbf16, #tpu.memory_space<vmem>>, vector<16x32xbf16>,
    %113 = vector.extract_strided_slice %110 {offsets = [16, 0], sizes = [16, 32], strides = [1, 1]} : vector<64x32xbf16> to vector<16x32xbf16>
    %c16_52 = arith.constant 16 : index
    %c32_53 = arith.constant 32 : index
    %114 = vector.load %arg10[%c16_52, %c32_53] : memref<32x128xbf16, #tpu.memory_space<vmem>>, vector<16x32xbf16>
    tpu.vector_store %arg10[%c16_52, %c32_53], %113 {strides = array<i32>} : memref<32x128xbf16, #tpu.memory_space<vmem>>, vector<16x32xbf16>,
    %115 = vector.extract_strided_slice %110 {offsets = [32, 0], sizes = [16, 32], strides = [1, 1]} : vector<64x32xbf16> to vector<16x32xbf16>
    %c16_54 = arith.constant 16 : index
    %c64_55 = arith.constant 64 : index
    %116 = vector.load %arg10[%c16_54, %c64_55] : memref<32x128xbf16, #tpu.memory_space<vmem>>, vector<16x32xbf16>
    tpu.vector_store %arg10[%c16_54, %c64_55], %115 {strides = array<i32>} : memref<32x128xbf16, #tpu.memory_space<vmem>>, vector<16x32xbf16>,
    %117 = vector.extract_strided_slice %110 {offsets = [48, 0], sizes = [16, 32], strides = [1, 1]} : vector<64x32xbf16> to vector<16x32xbf16>
    %c16_56 = arith.constant 16 : index
    %c96_57 = arith.constant 96 : index
    %118 = vector.load %arg10[%c16_56, %c96_57] : memref<32x128xbf16, #tpu.memory_space<vmem>>, vector<16x32xbf16>
    tpu.vector_store %arg10[%c16_56, %c96_57], %117 {strides = array<i32>} : memref<32x128xbf16, #tpu.memory_space<vmem>>, vector<16x32xbf16>,
    %c0_58 = arith.constant 0 : index
    %c0_59 = arith.constant 0 : index
    %119 = vector.load %arg10[%c0_58, %c0_59] : memref<32x128xbf16, #tpu.memory_space<vmem>>, vector<32x128xbf16>
    %c0_60 = arith.constant 0 : index
    %c0_61 = arith.constant 0 : index
    %120 = vector.load %arg6[%c0_60, %c0_61] : memref<1x128xbf16, #tpu.memory_space<vmem>>, vector<1x128xbf16>
    "tpu.trace_start"() <{level = 10 : i32, message = "oc,pc->op"}> : () -> ()
    %cst_62 = arith.constant dense<0.000000e+00> : vector<1x32xf32>
    %121 = tpu.matmul %120, %119, %cst_62 {dimension_numbers = #tpu.dot_dimension_numbers<[1], [1], [0], [0], [0, 0, 1, 0], [], []>} : vector<1x128xbf16>, vector<32x128xbf16>, vector<1x32xf32> -> vector<1x32xf32>
    "tpu.trace_stop"() : () -> ()
    %c0_63 = arith.constant 0 : index
    %c0_64 = arith.constant 0 : index
    %122 = vector.load %arg7[%c0_63, %c0_64] : memref<1x1xf32, #tpu.memory_space<vmem>>, vector<1x1xf32>
    %123 = vector.broadcast %122 : vector<1x1xf32> to vector<1x32xf32>
    %124 = arith.addf %121, %123 : vector<1x32xf32>
    %125 = math.tanh %124 : vector<1x32xf32>
    %c0_65 = arith.constant 0 : index
    %c0_66 = arith.constant 0 : index
    %c0_67 = arith.constant 0 : index
    %126 = vector.load %arg8[%c0_65, %c0_66, %c0_67] : memref<1x1x32xf32, #tpu.memory_space<vmem>>, vector<1x1x32xf32>
    %127 = vector.shape_cast %126 : vector<1x1x32xf32> to vector<1x32xf32>
    %128 = vector.shape_cast %125 : vector<1x32xf32> to vector<1x1x32xf32>
    tpu.vector_store %arg8[%c0_65, %c0_66, %c0_67], %128 {strides = array<i32>} : memref<1x1x32xf32, #tpu.memory_space<vmem>>, vector<1x1x32xf32>,
    return
  }
  func.func @transform_0(%arg0: i32) -> (i32, i32, i32) {
    %c0_i32 = arith.constant 0 : i32
    %c0_i32_0 = arith.constant 0 : i32
    %c0_i32_1 = arith.constant 0 : i32
    return %arg0, %c0_i32, %c0_i32_0 : i32, i32, i32
  }
  func.func @transform_1(%arg0: i32) -> (i32, i32) {
    %c0_i32 = arith.constant 0 : i32
    %c0_i32_0 = arith.constant 0 : i32
    %c0_i32_1 = arith.constant 0 : i32
    return %c0_i32, %c0_i32_0 : i32, i32
  }
  func.func @transform_2(%arg0: i32) -> (i32, i32) {
    %c0_i32 = arith.constant 0 : i32
    %c0_i32_0 = arith.constant 0 : i32
    %c0_i32_1 = arith.constant 0 : i32
    return %c0_i32, %c0_i32_0 : i32, i32
  }
  func.func @transform_3(%arg0: i32) -> (i32, i32) {
    %c0_i32 = arith.constant 0 : i32
    %c0_i32_0 = arith.constant 0 : i32
    %c0_i32_1 = arith.constant 0 : i32
    return %c0_i32, %c0_i32_0 : i32, i32
  }
  func.func @transform_4(%arg0: i32) -> (i32, i32) {
    %c0_i32 = arith.constant 0 : i32
    %c0_i32_0 = arith.constant 0 : i32
    %c0_i32_1 = arith.constant 0 : i32
    return %c0_i32, %c0_i32_0 : i32, i32
  }
  func.func @transform_5(%arg0: i32) -> (i32, i32) {
    %c0_i32 = arith.constant 0 : i32
    %c0_i32_0 = arith.constant 0 : i32
    %c0_i32_1 = arith.constant 0 : i32
    return %c0_i32, %c0_i32_0 : i32, i32
  }
  func.func @transform_6(%arg0: i32) -> (i32, i32) {
    %c0_i32 = arith.constant 0 : i32
    %c0_i32_0 = arith.constant 0 : i32
    %c0_i32_1 = arith.constant 0 : i32
    return %c0_i32, %c0_i32_0 : i32, i32
  }
  func.func @transform_7(%arg0: i32) -> (i32, i32, i32) {
    %c0_i32 = arith.constant 0 : i32
    %c0_i32_0 = arith.constant 0 : i32
    %c0_i32_1 = arith.constant 0 : i32
    return %arg0, %c0_i32, %c0_i32_0 : i32, i32, i32
  }
}

</mosaic_0001>

<llo_original>
// kernel: forward.1
$region0: #{forward.1}
  #allocation0 [shape = 'u32[]', space=smem, size = 0x4, offset = 0x4, fixed_abs, tag = 'smem constant byte address 0x4 - core index']
  #allocation1 [shape = 'u32[144,128]{1,0:T(1,128)}', space=vmem, size = 0x12000, scoped, tag = 'internal scratch']
  #allocation2 [shape = 'bf16[128,128]{1,0:T(8,128)(2,1)}', space=vmem, size = 0x8000, scoped, tag = 'scratch operand']
  #allocation3 [shape = 'bf16[32,128]{1,0:T(8,128)(2,1)}', space=vmem, size = 0x2000, scoped, tag = 'scratch operand']
  #allocation4 [shape = 'f32[1,1]{1,0:T(1,128)S(1)}', space=vmem, size = 0x200, scoped, tag = 'scoped memory for forward.1']
  %s0 = inlined_call_operand.vmem [shape: f32[1,512,3], index: 0, kind: input, shape index: {}]
  %s1 = inlined_call_operand.vmem [shape: f32[3,32], index: 1, kind: input, shape index: {}]
  %s2 = inlined_call_operand.vmem [shape: f32[1,32], index: 2, kind: input, shape index: {}]
  %s3 = inlined_call_operand.vmem [shape: bf16[128,32], index: 3, kind: input, shape index: {}]
  %s4 = inlined_call_operand.vmem [shape: f32[1,32], index: 4, kind: input, shape index: {}]
  %s5 = inlined_call_operand.vmem [shape: bf16[1,128], index: 5, kind: input, shape index: {}]
  %s6 = inlined_call_operand.<no memory space> [shape: f32[1,1], index: 6, kind: input, shape index: {}]
  %s7 = inlined_call_operand.vmem [shape: f32[1,1,32], index: 7, kind: output, shape index: {}]
  %s8 = sld [smem:[#allocation0]]
  $region38: #{forward.1} parent=0
    _
  %s10 = ssub.s32 1, %s8
  %s11 = scalar_select 0, %s10, %s8
  %v12 = vstv %s6
  %13 = vst [vmem:[#allocation4] sm:$0x1] %v12
  // Predicated region
  $region2: #{forward.1} parent=0 // pred_check
    _
  $region3: #{forward.1} parent=0 // pred_check_branch
    %15 = sbr.rel (0) target = $region5
  $region4: #{forward.1} parent=0 // pred_region
    _
  $region5: #{forward.1} parent=0 // pred_fallthru
    _
  // Predicated region
  $region6: #{forward.1} parent=0 // pred_check
    _
  $region7: #{forward.1} parent=0 // pred_check_branch
    %17 = sbr.rel (0) target = $region9
  $region8: #{forward.1} parent=0 // pred_region
    _
  $region9: #{forward.1} parent=0 // pred_fallthru
    _
  // Predicated region
  $region10: #{forward.1} parent=0 // pred_check
    _
  $region11: #{forward.1} parent=0 // pred_check_branch
    %19 = sbr.rel (0) target = $region13
  $region12: #{forward.1} parent=0 // pred_region
    _
  $region13: #{forward.1} parent=0 // pred_fallthru
    _
  // Predicated region
  $region14: #{forward.1} parent=0 // pred_check
    _
  $region15: #{forward.1} parent=0 // pred_check_branch
    %21 = sbr.rel (0) target = $region17
  $region16: #{forward.1} parent=0 // pred_region
    _
  $region17: #{forward.1} parent=0 // pred_fallthru
    _
  // Predicated region
  $region18: #{forward.1} parent=0 // pred_check
    _
  $region19: #{forward.1} parent=0 // pred_check_branch
    %23 = sbr.rel (0) target = $region21
  $region20: #{forward.1} parent=0 // pred_region
    _
  $region21: #{forward.1} parent=0 // pred_fallthru
    _
  // Predicated region
  $region22: #{forward.1} parent=0 // pred_check
    _
  $region23: #{forward.1} parent=0 // pred_check_branch
    %25 = sbr.rel (0) target = $region25
  $region24: #{forward.1} parent=0 // pred_region
    _
  $region25: #{forward.1} parent=0 // pred_fallthru
    _
  // Predicated region
  $region26: #{forward.1} parent=0 // pred_check
    _
  $region27: #{forward.1} parent=0 // pred_check_branch
    %27 = sbr.rel (0) target = $region29
  $region28: #{forward.1} parent=0 // pred_region
    _
  $region29: #{forward.1} parent=0 // pred_fallthru
    _
  %v29 = vld [vmem:[%s0] sm:$0xff]
  %v30 = vld [vmem:[%s0 + $0x8] sm:$0xff]
  %v31 = vld [vmem:[%s0 + $0x10] sm:$0xff]
  %v32 = vld [vmem:[%s0 + $0x18] sm:$0xff]
  %v33 = vld [vmem:[%s0 + $0x20] sm:$0xff]
  %v34 = vld [vmem:[%s0 + $0x28] sm:$0xff]
  %v35 = vld [vmem:[%s0 + $0x30] sm:$0xff]
  %v36 = vld [vmem:[%s0 + $0x38] sm:$0xff]
  %v37 = vld [vmem:[%s0 + $0x40] sm:$0xff]
  %v38 = vld [vmem:[%s0 + $0x48] sm:$0xff]
  %v39 = vld [vmem:[%s0 + $0x50] sm:$0xff]
  %v40 = vld [vmem:[%s0 + $0x58] sm:$0xff]
  %v41 = vld [vmem:[%s0 + $0x60] sm:$0xff]
  %v42 = vld [vmem:[%s0 + $0x68] sm:$0xff]
  %v43 = vld [vmem:[%s0 + $0x70] sm:$0xff]
  %v44 = vld [vmem:[%s0 + $0x78] sm:$0xff]
  %v45 = vld [vmem:[%s0 + $0x80] sm:$0xff]
  %v46 = vld [vmem:[%s0 + $0x88] sm:$0xff]
  %v47 = vld [vmem:[%s0 + $0x90] sm:$0xff]
  %v48 = vld [vmem:[%s0 + $0x98] sm:$0xff]
  %v49 = vld [vmem:[%s0 + $0xa0] sm:$0xff]
  %v50 = vld [vmem:[%s0 + $0xa8] sm:$0xff]
  %v51 = vld [vmem:[%s0 + $0xb0] sm:$0xff]
  %v52 = vld [vmem:[%s0 + $0xb8] sm:$0xff]
  %v53 = vld [vmem:[%s0 + $0xc0] sm:$0xff]
  %v54 = vld [vmem:[%s0 + $0xc8] sm:$0xff]
  %v55 = vld [vmem:[%s0 + $0xd0] sm:$0xff]
  %v56 = vld [vmem:[%s0 + $0xd8] sm:$0xff]
  %v57 = vld [vmem:[%s0 + $0xe0] sm:$0xff]
  %v58 = vld [vmem:[%s0 + $0xe8] sm:$0xff]
  %v59 = vld [vmem:[%s0 + $0xf0] sm:$0xff]
  %v60 = vld [vmem:[%s0 + $0xf8] sm:$0xff]
  %v61 = vld [vmem:[%s0 + $0x100] sm:$0xff]
  %v62 = vld [vmem:[%s0 + $0x108] sm:$0xff]
  %v63 = vld [vmem:[%s0 + $0x110] sm:$0xff]
  %v64 = vld [vmem:[%s0 + $0x118] sm:$0xff]
  %v65 = vld [vmem:[%s0 + $0x120] sm:$0xff]
  %v66 = vld [vmem:[%s0 + $0x128] sm:$0xff]
  %v67 = vld [vmem:[%s0 + $0x130] sm:$0xff]
  %v68 = vld [vmem:[%s0 + $0x138] sm:$0xff]
  %v69 = vld [vmem:[%s0 + $0x140] sm:$0xff]
  %v70 = vld [vmem:[%s0 + $0x148] sm:$0xff]
  %v71 = vld [vmem:[%s0 + $0x150] sm:$0xff]
  %v72 = vld [vmem:[%s0 + $0x158] sm:$0xff]
  %v73 = vld [vmem:[%s0 + $0x160] sm:$0xff]
  %v74 = vld [vmem:[%s0 + $0x168] sm:$0xff]
  %v75 = vld [vmem:[%s0 + $0x170] sm:$0xff]
  %v76 = vld [vmem:[%s0 + $0x178] sm:$0xff]
  %v77 = vld [vmem:[%s0 + $0x180] sm:$0xff]
  %v78 = vld [vmem:[%s0 + $0x188] sm:$0xff]
  %v79 = vld [vmem:[%s0 + $0x190] sm:$0xff]
  %v80 = vld [vmem:[%s0 + $0x198] sm:$0xff]
  %v81 = vld [vmem:[%s0 + $0x1a0] sm:$0xff]
  %v82 = vld [vmem:[%s0 + $0x1a8] sm:$0xff]
  %v83 = vld [vmem:[%s0 + $0x1b0] sm:$0xff]
  %v84 = vld [vmem:[%s0 + $0x1b8] sm:$0xff]
  %v85 = vld [vmem:[%s0 + $0x1c0] sm:$0xff]
  %v86 = vld [vmem:[%s0 + $0x1c8] sm:$0xff]
  %v87 = vld [vmem:[%s0 + $0x1d0] sm:$0xff]
  %v88 = vld [vmem:[%s0 + $0x1d8] sm:$0xff]
  %v89 = vld [vmem:[%s0 + $0x1e0] sm:$0xff]
  %v90 = vld [vmem:[%s0 + $0x1e8] sm:$0xff]
  %v91 = vld [vmem:[%s0 + $0x1f0] sm:$0xff]
  %v92 = vld [vmem:[%s0 + $0x1f8] sm:$0xff]
  %v93 = vld [vmem:[%s1] sm:$0x1]
  %95 = vset.pattern.permute.xlu0 0
  %96 = vperm.xlu0 %95, %v29
  %v97 = vpop.permute.xlu0 %96
  %100 = vset.pattern.permute.xlu0 0
  %101 = vperm.xlu0 %100, %v30
  %v102 = vpop.permute.xlu0 %101
  %105 = vset.pattern.permute.xlu0 0
  %106 = vperm.xlu0 %105, %v31
  %v107 = vpop.permute.xlu0 %106
  %110 = vset.pattern.permute.xlu0 0
  %111 = vperm.xlu0 %110, %v32
  %v112 = vpop.permute.xlu0 %111
  %115 = vset.pattern.permute.xlu0 0
  %116 = vperm.xlu0 %115, %v33
  %v117 = vpop.permute.xlu0 %116
  %120 = vset.pattern.permute.xlu0 0
  %121 = vperm.xlu0 %120, %v34
  %v122 = vpop.permute.xlu0 %121
  %125 = vset.pattern.permute.xlu0 0
  %126 = vperm.xlu0 %125, %v35
  %v127 = vpop.permute.xlu0 %126
  %130 = vset.pattern.permute.xlu0 0
  %131 = vperm.xlu0 %130, %v36
  %v132 = vpop.permute.xlu0 %131
  %135 = vset.pattern.permute.xlu0 0
  %136 = vperm.xlu0 %135, %v37
  %v137 = vpop.permute.xlu0 %136
  %140 = vset.pattern.permute.xlu0 0
  %141 = vperm.xlu0 %140, %v38
  %v142 = vpop.permute.xlu0 %141
  %145 = vset.pattern.permute.xlu0 0
  %146 = vperm.xlu0 %145, %v39
  %v147 = vpop.permute.xlu0 %146
  %150 = vset.pattern.permute.xlu0 0
  %151 = vperm.xlu0 %150, %v40
  %v152 = vpop.permute.xlu0 %151
  %155 = vset.pattern.permute.xlu0 0
  %156 = vperm.xlu0 %155, %v41
  %v157 = vpop.permute.xlu0 %156
  %160 = vset.pattern.permute.xlu0 0
  %161 = vperm.xlu0 %160, %v42
  %v162 = vpop.permute.xlu0 %161
  %165 = vset.pattern.permute.xlu0 0
  %166 = vperm.xlu0 %165, %v43
  %v167 = vpop.permute.xlu0 %166
  %170 = vset.pattern.permute.xlu0 0
  %171 = vperm.xlu0 %170, %v44
  %v172 = vpop.permute.xlu0 %171
  %175 = vset.pattern.permute.xlu0 0
  %176 = vperm.xlu0 %175, %v45
  %v177 = vpop.permute.xlu0 %176
  %180 = vset.pattern.permute.xlu0 0
  %181 = vperm.xlu0 %180, %v46
  %v182 = vpop.permute.xlu0 %181
  %185 = vset.pattern.permute.xlu0 0
  %186 = vperm.xlu0 %185, %v47
  %v187 = vpop.permute.xlu0 %186
  %190 = vset.pattern.permute.xlu0 0
  %191 = vperm.xlu0 %190, %v48
  %v192 = vpop.permute.xlu0 %191
  %195 = vset.pattern.permute.xlu0 0
  %196 = vperm.xlu0 %195, %v49
  %v197 = vpop.permute.xlu0 %196
  %200 = vset.pattern.permute.xlu0 0
  %201 = vperm.xlu0 %200, %v50
  %v202 = vpop.permute.xlu0 %201
  %205 = vset.pattern.permute.xlu0 0
  %206 = vperm.xlu0 %205, %v51
  %v207 = vpop.permute.xlu0 %206
  %210 = vset.pattern.permute.xlu0 0
  %211 = vperm.xlu0 %210, %v52
  %v212 = vpop.permute.xlu0 %211
  %215 = vset.pattern.permute.xlu0 0
  %216 = vperm.xlu0 %215, %v53
  %v217 = vpop.permute.xlu0 %216
  %220 = vset.pattern.permute.xlu0 0
  %221 = vperm.xlu0 %220, %v54
  %v222 = vpop.permute.xlu0 %221
  %225 = vset.pattern.permute.xlu0 0
  %226 = vperm.xlu0 %225, %v55
  %v227 = vpop.permute.xlu0 %226
  %230 = vset.pattern.permute.xlu0 0
  %231 = vperm.xlu0 %230, %v56
  %v232 = vpop.permute.xlu0 %231
  %235 = vset.pattern.permute.xlu0 0
  %236 = vperm.xlu0 %235, %v57
  %v237 = vpop.permute.xlu0 %236
  %240 = vset.pattern.permute.xlu0 0
  %241 = vperm.xlu0 %240, %v58
  %v242 = vpop.permute.xlu0 %241
  %245 = vset.pattern.permute.xlu0 0
  %246 = vperm.xlu0 %245, %v59
  %v247 = vpop.permute.xlu0 %246
  %250 = vset.pattern.permute.xlu0 0
  %251 = vperm.xlu0 %250, %v60
  %v252 = vpop.permute.xlu0 %251
  %255 = vset.pattern.permute.xlu0 0
  %256 = vperm.xlu0 %255, %v61
  %v257 = vpop.permute.xlu0 %256
  %260 = vset.pattern.permute.xlu0 0
  %261 = vperm.xlu0 %260, %v62
  %v262 = vpop.permute.xlu0 %261
  %265 = vset.pattern.permute.xlu0 0
  %266 = vperm.xlu0 %265, %v63
  %v267 = vpop.permute.xlu0 %266
  %270 = vset.pattern.permute.xlu0 0
  %271 = vperm.xlu0 %270, %v64
  %v272 = vpop.permute.xlu0 %271
  %275 = vset.pattern.permute.xlu0 0
  %276 = vperm.xlu0 %275, %v65
  %v277 = vpop.permute.xlu0 %276
  %280 = vset.pattern.permute.xlu0 0
  %281 = vperm.xlu0 %280, %v66
  %v282 = vpop.permute.xlu0 %281
  %285 = vset.pattern.permute.xlu0 0
  %286 = vperm.xlu0 %285, %v67
  %v287 = vpop.permute.xlu0 %286
  %290 = vset.pattern.permute.xlu0 0
  %291 = vperm.xlu0 %290, %v68
  %v292 = vpop.permute.xlu0 %291
  %295 = vset.pattern.permute.xlu0 0
  %296 = vperm.xlu0 %295, %v69
  %v297 = vpop.permute.xlu0 %296
  %300 = vset.pattern.permute.xlu0 0
  %301 = vperm.xlu0 %300, %v70
  %v302 = vpop.permute.xlu0 %301
  %305 = vset.pattern.permute.xlu0 0
  %306 = vperm.xlu0 %305, %v71
  %v307 = vpop.permute.xlu0 %306
  %310 = vset.pattern.permute.xlu0 0
  %311 = vperm.xlu0 %310, %v72
  %v312 = vpop.permute.xlu0 %311
  %315 = vset.pattern.permute.xlu0 0
  %316 = vperm.xlu0 %315, %v73
  %v317 = vpop.permute.xlu0 %316
  %320 = vset.pattern.permute.xlu0 0
  %321 = vperm.xlu0 %320, %v74
  %v322 = vpop.permute.xlu0 %321
  %325 = vset.pattern.permute.xlu0 0
  %326 = vperm.xlu0 %325, %v75
  %v327 = vpop.permute.xlu0 %326
  %330 = vset.pattern.permute.xlu0 0
  %331 = vperm.xlu0 %330, %v76
  %v332 = vpop.permute.xlu0 %331
  %335 = vset.pattern.permute.xlu0 0
  %336 = vperm.xlu0 %335, %v77
  %v337 = vpop.permute.xlu0 %336
  %340 = vset.pattern.permute.xlu0 0
  %341 = vperm.xlu0 %340, %v78
  %v342 = vpop.permute.xlu0 %341
  %345 = vset.pattern.permute.xlu0 0
  %346 = vperm.xlu0 %345, %v79
  %v347 = vpop.permute.xlu0 %346
  %350 = vset.pattern.permute.xlu0 0
  %351 = vperm.xlu0 %350, %v80
  %v352 = vpop.permute.xlu0 %351
  %355 = vset.pattern.permute.xlu0 0
  %356 = vperm.xlu0 %355, %v81
  %v357 = vpop.permute.xlu0 %356
  %360 = vset.pattern.permute.xlu0 0
  %361 = vperm.xlu0 %360, %v82
  %v362 = vpop.permute.xlu0 %361
  %365 = vset.pattern.permute.xlu0 0
  %366 = vperm.xlu0 %365, %v83
  %v367 = vpop.permute.xlu0 %366
  %370 = vset.pattern.permute.xlu0 0
  %371 = vperm.xlu0 %370, %v84
  %v372 = vpop.permute.xlu0 %371
  %375 = vset.pattern.permute.xlu0 0
  %376 = vperm.xlu0 %375, %v85
  %v377 = vpop.permute.xlu0 %376
  %380 = vset.pattern.permute.xlu0 0
  %381 = vperm.xlu0 %380, %v86
  %v382 = vpop.permute.xlu0 %381
  %385 = vset.pattern.permute.xlu0 0
  %386 = vperm.xlu0 %385, %v87
  %v387 = vpop.permute.xlu0 %386
  %390 = vset.pattern.permute.xlu0 0
  %391 = vperm.xlu0 %390, %v88
  %v392 = vpop.permute.xlu0 %391
  %395 = vset.pattern.permute.xlu0 0
  %396 = vperm.xlu0 %395, %v89
  %v397 = vpop.permute.xlu0 %396
  %400 = vset.pattern.permute.xlu0 0
  %401 = vperm.xlu0 %400, %v90
  %v402 = vpop.permute.xlu0 %401
  %405 = vset.pattern.permute.xlu0 0
  %406 = vperm.xlu0 %405, %v91
  %v407 = vpop.permute.xlu0 %406
  %410 = vset.pattern.permute.xlu0 0
  %411 = vperm.xlu0 %410, %v92
  %v412 = vpop.permute.xlu0 %411
  %v414 = vlaneseq
  %v415 = vshrl.u32 %v414, 7
  %v416 = vsub.s32 0, %v415
  %v417 = vrot.slane %v93, %v416
  %v418 = vmul.f32 %v97, %v417
  %v419 = vmul.f32 %v102, %v417
  %v420 = vmul.f32 %v107, %v417
  %v421 = vmul.f32 %v112, %v417
  %v422 = vmul.f32 %v117, %v417
  %v423 = vmul.f32 %v122, %v417
  %v424 = vmul.f32 %v127, %v417
  %v425 = vmul.f32 %v132, %v417
  %v426 = vmul.f32 %v137, %v417
  %v427 = vmul.f32 %v142, %v417
  %v428 = vmul.f32 %v147, %v417
  %v429 = vmul.f32 %v152, %v417
  %v430 = vmul.f32 %v157, %v417
  %v431 = vmul.f32 %v162, %v417
  %v432 = vmul.f32 %v167, %v417
  %v433 = vmul.f32 %v172, %v417
  %v434 = vmul.f32 %v177, %v417
  %v435 = vmul.f32 %v182, %v417
  %v436 = vmul.f32 %v187, %v417
  %v437 = vmul.f32 %v192, %v417
  %v438 = vmul.f32 %v197, %v417
  %v439 = vmul.f32 %v202, %v417
  %v440 = vmul.f32 %v207, %v417
  %v441 = vmul.f32 %v212, %v417
  %v442 = vmul.f32 %v217, %v417
  %v443 = vmul.f32 %v222, %v417
  %v444 = vmul.f32 %v227, %v417
  %v445 = vmul.f32 %v232, %v417
  %v446 = vmul.f32 %v237, %v417
  %v447 = vmul.f32 %v242, %v417
  %v448 = vmul.f32 %v247, %v417
  %v449 = vmul.f32 %v252, %v417
  %v450 = vmul.f32 %v257, %v417
  %v451 = vmul.f32 %v262, %v417
  %v452 = vmul.f32 %v267, %v417
  %v453 = vmul.f32 %v272, %v417
  %v454 = vmul.f32 %v277, %v417
  %v455 = vmul.f32 %v282, %v417
  %v456 = vmul.f32 %v287, %v417
  %v457 = vmul.f32 %v292, %v417
  %v458 = vmul.f32 %v297, %v417
  %v459 = vmul.f32 %v302, %v417
  %v460 = vmul.f32 %v307, %v417
  %v461 = vmul.f32 %v312, %v417
  %v462 = vmul.f32 %v317, %v417
  %v463 = vmul.f32 %v322, %v417
  %v464 = vmul.f32 %v327, %v417
  %v465 = vmul.f32 %v332, %v417
  %v466 = vmul.f32 %v337, %v417
  %v467 = vmul.f32 %v342, %v417
  %v468 = vmul.f32 %v347, %v417
  %v469 = vmul.f32 %v352, %v417
  %v470 = vmul.f32 %v357, %v417
  %v471 = vmul.f32 %v362, %v417
  %v472 = vmul.f32 %v367, %v417
  %v473 = vmul.f32 %v372, %v417
  %v474 = vmul.f32 %v377, %v417
  %v475 = vmul.f32 %v382, %v417
  %v476 = vmul.f32 %v387, %v417
  %v477 = vmul.f32 %v392, %v417
  %v478 = vmul.f32 %v397, %v417
  %v479 = vmul.f32 %v402, %v417
  %v480 = vmul.f32 %v407, %v417
  %v481 = vmul.f32 %v412, %v417
  %v482 = vld [vmem:[%s1 + $0x1] sm:$0x1]
  %483 = vset.pattern.permute.xlu0 1
  %484 = vperm.xlu0 %483, %v29
  %v485 = vpop.permute.xlu0 %484
  %487 = vset.pattern.permute.xlu0 1
  %488 = vperm.xlu0 %487, %v30
  %v489 = vpop.permute.xlu0 %488
  %491 = vset.pattern.permute.xlu0 1
  %492 = vperm.xlu0 %491, %v31
  %v493 = vpop.permute.xlu0 %492
  %495 = vset.pattern.permute.xlu0 1
  %496 = vperm.xlu0 %495, %v32
  %v497 = vpop.permute.xlu0 %496
  %499 = vset.pattern.permute.xlu0 1
  %500 = vperm.xlu0 %499, %v33
  %v501 = vpop.permute.xlu0 %500
  %503 = vset.pattern.permute.xlu0 1
  %504 = vperm.xlu0 %503, %v34
  %v505 = vpop.permute.xlu0 %504
  %507 = vset.pattern.permute.xlu0 1
  %508 = vperm.xlu0 %507, %v35
  %v509 = vpop.permute.xlu0 %508
  %511 = vset.pattern.permute.xlu0 1
  %512 = vperm.xlu0 %511, %v36
  %v513 = vpop.permute.xlu0 %512
  %515 = vset.pattern.permute.xlu0 1
  %516 = vperm.xlu0 %515, %v37
  %v517 = vpop.permute.xlu0 %516
  %519 = vset.pattern.permute.xlu0 1
  %520 = vperm.xlu0 %519, %v38
  %v521 = vpop.permute.xlu0 %520
  %523 = vset.pattern.permute.xlu0 1
  %524 = vperm.xlu0 %523, %v39
  %v525 = vpop.permute.xlu0 %524
  %527 = vset.pattern.permute.xlu0 1
  %528 = vperm.xlu0 %527, %v40
  %v529 = vpop.permute.xlu0 %528
  %531 = vset.pattern.permute.xlu0 1
  %532 = vperm.xlu0 %531, %v41
  %v533 = vpop.permute.xlu0 %532
  %535 = vset.pattern.permute.xlu0 1
  %536 = vperm.xlu0 %535, %v42
  %v537 = vpop.permute.xlu0 %536
  %539 = vset.pattern.permute.xlu0 1
  %540 = vperm.xlu0 %539, %v43
  %v541 = vpop.permute.xlu0 %540
  %543 = vset.pattern.permute.xlu0 1
  %544 = vperm.xlu0 %543, %v44
  %v545 = vpop.permute.xlu0 %544
  %547 = vset.pattern.permute.xlu0 1
  %548 = vperm.xlu0 %547, %v45
  %v549 = vpop.permute.xlu0 %548
  %551 = vset.pattern.permute.xlu0 1
  %552 = vperm.xlu0 %551, %v46
  %v553 = vpop.permute.xlu0 %552
  %555 = vset.pattern.permute.xlu0 1
  %556 = vperm.xlu0 %555, %v47
  %v557 = vpop.permute.xlu0 %556
  %559 = vset.pattern.permute.xlu0 1
  %560 = vperm.xlu0 %559, %v48
  %v561 = vpop.permute.xlu0 %560
  %563 = vset.pattern.permute.xlu0 1
  %564 = vperm.xlu0 %563, %v49
  %v565 = vpop.permute.xlu0 %564
  %567 = vset.pattern.permute.xlu0 1
  %568 = vperm.xlu0 %567, %v50
  %v569 = vpop.permute.xlu0 %568
  %571 = vset.pattern.permute.xlu0 1
  %572 = vperm.xlu0 %571, %v51
  %v573 = vpop.permute.xlu0 %572
  %575 = vset.pattern.permute.xlu0 1
  %576 = vperm.xlu0 %575, %v52
  %v577 = vpop.permute.xlu0 %576
  %579 = vset.pattern.permute.xlu0 1
  %580 = vperm.xlu0 %579, %v53
  %v581 = vpop.permute.xlu0 %580
  %583 = vset.pattern.permute.xlu0 1
  %584 = vperm.xlu0 %583, %v54
  %v585 = vpop.permute.xlu0 %584
  %587 = vset.pattern.permute.xlu0 1
  %588 = vperm.xlu0 %587, %v55
  %v589 = vpop.permute.xlu0 %588
  %591 = vset.pattern.permute.xlu0 1
  %592 = vperm.xlu0 %591, %v56
  %v593 = vpop.permute.xlu0 %592
  %595 = vset.pattern.permute.xlu0 1
  %596 = vperm.xlu0 %595, %v57
  %v597 = vpop.permute.xlu0 %596
  %599 = vset.pattern.permute.xlu0 1
  %600 = vperm.xlu0 %599, %v58
  %v601 = vpop.permute.xlu0 %600
  %603 = vset.pattern.permute.xlu0 1
  %604 = vperm.xlu0 %603, %v59
  %v605 = vpop.permute.xlu0 %604
  %607 = vset.pattern.permute.xlu0 1
  %608 = vperm.xlu0 %607, %v60
  %v609 = vpop.permute.xlu0 %608
  %611 = vset.pattern.permute.xlu0 1
  %612 = vperm.xlu0 %611, %v61
  %v613 = vpop.permute.xlu0 %612
  %615 = vset.pattern.permute.xlu0 1
  %616 = vperm.xlu0 %615, %v62
  %v617 = vpop.permute.xlu0 %616
  %619 = vset.pattern.permute.xlu0 1
  %620 = vperm.xlu0 %619, %v63
  %v621 = vpop.permute.xlu0 %620
  %623 = vset.pattern.permute.xlu0 1
  %624 = vperm.xlu0 %623, %v64
  %v625 = vpop.permute.xlu0 %624
  %627 = vset.pattern.permute.xlu0 1
  %628 = vperm.xlu0 %627, %v65
  %v629 = vpop.permute.xlu0 %628
  %631 = vset.pattern.permute.xlu0 1
  %632 = vperm.xlu0 %631, %v66
  %v633 = vpop.permute.xlu0 %632
  %635 = vset.pattern.permute.xlu0 1
  %636 = vperm.xlu0 %635, %v67
  %v637 = vpop.permute.xlu0 %636
  %639 = vset.pattern.permute.xlu0 1
  %640 = vperm.xlu0 %639, %v68
  %v641 = vpop.permute.xlu0 %640
  %643 = vset.pattern.permute.xlu0 1
  %644 = vperm.xlu0 %643, %v69
  %v645 = vpop.permute.xlu0 %644
  %647 = vset.pattern.permute.xlu0 1
  %648 = vperm.xlu0 %647, %v70
  %v649 = vpop.permute.xlu0 %648
  %651 = vset.pattern.permute.xlu0 1
  %652 = vperm.xlu0 %651, %v71
  %v653 = vpop.permute.xlu0 %652
  %655 = vset.pattern.permute.xlu0 1
  %656 = vperm.xlu0 %655, %v72
  %v657 = vpop.permute.xlu0 %656
  %659 = vset.pattern.permute.xlu0 1
  %660 = vperm.xlu0 %659, %v73
  %v661 = vpop.permute.xlu0 %660
  %663 = vset.pattern.permute.xlu0 1
  %664 = vperm.xlu0 %663, %v74
  %v665 = vpop.permute.xlu0 %664
  %667 = vset.pattern.permute.xlu0 1
  %668 = vperm.xlu0 %667, %v75
  %v669 = vpop.permute.xlu0 %668
  %671 = vset.pattern.permute.xlu0 1
  %672 = vperm.xlu0 %671, %v76
  %v673 = vpop.permute.xlu0 %672
  %675 = vset.pattern.permute.xlu0 1
  %676 = vperm.xlu0 %675, %v77
  %v677 = vpop.permute.xlu0 %676
  %679 = vset.pattern.permute.xlu0 1
  %680 = vperm.xlu0 %679, %v78
  %v681 = vpop.permute.xlu0 %680
  %683 = vset.pattern.permute.xlu0 1
  %684 = vperm.xlu0 %683, %v79
  %v685 = vpop.permute.xlu0 %684
  %687 = vset.pattern.permute.xlu0 1
  %688 = vperm.xlu0 %687, %v80
  %v689 = vpop.permute.xlu0 %688
  %691 = vset.pattern.permute.xlu0 1
  %692 = vperm.xlu0 %691, %v81
  %v693 = vpop.permute.xlu0 %692
  %695 = vset.pattern.permute.xlu0 1
  %696 = vperm.xlu0 %695, %v82
  %v697 = vpop.permute.xlu0 %696
  %699 = vset.pattern.permute.xlu0 1
  %700 = vperm.xlu0 %699, %v83
  %v701 = vpop.permute.xlu0 %700
  %703 = vset.pattern.permute.xlu0 1
  %704 = vperm.xlu0 %703, %v84
  %v705 = vpop.permute.xlu0 %704
  %707 = vset.pattern.permute.xlu0 1
  %708 = vperm.xlu0 %707, %v85
  %v709 = vpop.permute.xlu0 %708
  %711 = vset.pattern.permute.xlu0 1
  %712 = vperm.xlu0 %711, %v86
  %v713 = vpop.permute.xlu0 %712
  %715 = vset.pattern.permute.xlu0 1
  %716 = vperm.xlu0 %715, %v87
  %v717 = vpop.permute.xlu0 %716
  %719 = vset.pattern.permute.xlu0 1
  %720 = vperm.xlu0 %719, %v88
  %v721 = vpop.permute.xlu0 %720
  %723 = vset.pattern.permute.xlu0 1
  %724 = vperm.xlu0 %723, %v89
  %v725 = vpop.permute.xlu0 %724
  %727 = vset.pattern.permute.xlu0 1
  %728 = vperm.xlu0 %727, %v90
  %v729 = vpop.permute.xlu0 %728
  %731 = vset.pattern.permute.xlu0 1
  %732 = vperm.xlu0 %731, %v91
  %v733 = vpop.permute.xlu0 %732
  %735 = vset.pattern.permute.xlu0 1
  %736 = vperm.xlu0 %735, %v92
  %v737 = vpop.permute.xlu0 %736
  %v739 = vlaneseq
  %v740 = vshrl.u32 %v739, 7
  %v741 = vsub.s32 0, %v740
  %v742 = vrot.slane %v482, %v741
  %v743 = vmul.f32 %v485, %v742
  %v744 = vmul.f32 %v489, %v742
  %v745 = vmul.f32 %v493, %v742
  %v746 = vmul.f32 %v497, %v742
  %v747 = vmul.f32 %v501, %v742
  %v748 = vmul.f32 %v505, %v742
  %v749 = vmul.f32 %v509, %v742
  %v750 = vmul.f32 %v513, %v742
  %v751 = vmul.f32 %v517, %v742
  %v752 = vmul.f32 %v521, %v742
  %v753 = vmul.f32 %v525, %v742
  %v754 = vmul.f32 %v529, %v742
  %v755 = vmul.f32 %v533, %v742
  %v756 = vmul.f32 %v537, %v742
  %v757 = vmul.f32 %v541, %v742
  %v758 = vmul.f32 %v545, %v742
  %v759 = vmul.f32 %v549, %v742
  %v760 = vmul.f32 %v553, %v742
  %v761 = vmul.f32 %v557, %v742
  %v762 = vmul.f32 %v561, %v742
  %v763 = vmul.f32 %v565, %v742
  %v764 = vmul.f32 %v569, %v742
  %v765 = vmul.f32 %v573, %v742
  %v766 = vmul.f32 %v577, %v742
  %v767 = vmul.f32 %v581, %v742
  %v768 = vmul.f32 %v585, %v742
  %v769 = vmul.f32 %v589, %v742
  %v770 = vmul.f32 %v593, %v742
  %v771 = vmul.f32 %v597, %v742
  %v772 = vmul.f32 %v601, %v742
  %v773 = vmul.f32 %v605, %v742
  %v774 = vmul.f32 %v609, %v742
  %v775 = vmul.f32 %v613, %v742
  %v776 = vmul.f32 %v617, %v742
  %v777 = vmul.f32 %v621, %v742
  %v778 = vmul.f32 %v625, %v742
  %v779 = vmul.f32 %v629, %v742
  %v780 = vmul.f32 %v633, %v742
  %v781 = vmul.f32 %v637, %v742
  %v782 = vmul.f32 %v641, %v742
  %v783 = vmul.f32 %v645, %v742
  %v784 = vmul.f32 %v649, %v742
  %v785 = vmul.f32 %v653, %v742
  %v786 = vmul.f32 %v657, %v742
  %v787 = vmul.f32 %v661, %v742
  %v788 = vmul.f32 %v665, %v742
  %v789 = vmul.f32 %v669, %v742
  %v790 = vmul.f32 %v673, %v742
  %v791 = vmul.f32 %v677, %v742
  %v792 = vmul.f32 %v681, %v742
  %v793 = vmul.f32 %v685, %v742
  %v794 = vmul.f32 %v689, %v742
  %v795 = vmul.f32 %v693, %v742
  %v796 = vmul.f32 %v697, %v742
  %v797 = vmul.f32 %v701, %v742
  %v798 = vmul.f32 %v705, %v742
  %v799 = vmul.f32 %v709, %v742
  %v800 = vmul.f32 %v713, %v742
  %v801 = vmul.f32 %v717, %v742
  %v802 = vmul.f32 %v721, %v742
  %v803 = vmul.f32 %v725, %v742
  %v804 = vmul.f32 %v729, %v742
  %v805 = vmul.f32 %v733, %v742
  %v806 = vmul.f32 %v737, %v742
  %v807 = vadd.f32 %v418, %v743
  %v808 = vadd.f32 %v419, %v744
  %v809 = vadd.f32 %v420, %v745
  %v810 = vadd.f32 %v421, %v746
  %v811 = vadd.f32 %v422, %v747
  %v812 = vadd.f32 %v423, %v748
  %v813 = vadd.f32 %v424, %v749
  %v814 = vadd.f32 %v425, %v750
  %v815 = vadd.f32 %v426, %v751
  %v816 = vadd.f32 %v427, %v752
  %v817 = vadd.f32 %v428, %v753
  %v818 = vadd.f32 %v429, %v754
  %v819 = vadd.f32 %v430, %v755
  %v820 = vadd.f32 %v431, %v756
  %v821 = vadd.f32 %v432, %v757
  %v822 = vadd.f32 %v433, %v758
  %v823 = vadd.f32 %v434, %v759
  %v824 = vadd.f32 %v435, %v760
  %v825 = vadd.f32 %v436, %v761
  %v826 = vadd.f32 %v437, %v762
  %v827 = vadd.f32 %v438, %v763
  %v828 = vadd.f32 %v439, %v764
  %v829 = vadd.f32 %v440, %v765
  %v830 = vadd.f32 %v441, %v766
  %v831 = vadd.f32 %v442, %v767
  %v832 = vadd.f32 %v443, %v768
  %v833 = vadd.f32 %v444, %v769
  %v834 = vadd.f32 %v445, %v770
  %v835 = vadd.f32 %v446, %v771
  %v836 = vadd.f32 %v447, %v772
  %v837 = vadd.f32 %v448, %v773
  %v838 = vadd.f32 %v449, %v774
  %v839 = vadd.f32 %v450, %v775
  %v840 = vadd.f32 %v451, %v776
  %v841 = vadd.f32 %v452, %v777
  %v842 = vadd.f32 %v453, %v778
  %v843 = vadd.f32 %v454, %v779
  %v844 = vadd.f32 %v455, %v780
  %v845 = vadd.f32 %v456, %v781
  %v846 = vadd.f32 %v457, %v782
  %v847 = vadd.f32 %v458, %v783
  %v848 = vadd.f32 %v459, %v784
  %v849 = vadd.f32 %v460, %v785
  %v850 = vadd.f32 %v461, %v786
  %v851 = vadd.f32 %v462, %v787
  %v852 = vadd.f32 %v463, %v788
  %v853 = vadd.f32 %v464, %v789
  %v854 = vadd.f32 %v465, %v790
  %v855 = vadd.f32 %v466, %v791
  %v856 = vadd.f32 %v467, %v792
  %v857 = vadd.f32 %v468, %v793
  %v858 = vadd.f32 %v469, %v794
  %v859 = vadd.f32 %v470, %v795
  %v860 = vadd.f32 %v471, %v796
  %v861 = vadd.f32 %v472, %v797
  %v862 = vadd.f32 %v473, %v798
  %v863 = vadd.f32 %v474, %v799
  %v864 = vadd.f32 %v475, %v800
  %v865 = vadd.f32 %v476, %v801
  %v866 = vadd.f32 %v477, %v802
  %v867 = vadd.f32 %v478, %v803
  %v868 = vadd.f32 %v479, %v804
  %v869 = vadd.f32 %v480, %v805
  %v870 = vadd.f32 %v481, %v806
  %v871 = vld [vmem:[%s1 + $0x2] sm:$0x1]
  %872 = vset.pattern.permute.xlu0 2
  %873 = vperm.xlu0 %872, %v29
  %v874 = vpop.permute.xlu0 %873
  %876 = vset.pattern.permute.xlu0 2
  %877 = vperm.xlu0 %876, %v30
  %v878 = vpop.permute.xlu0 %877
  %880 = vset.pattern.permute.xlu0 2
  %881 = vperm.xlu0 %880, %v31
  %v882 = vpop.permute.xlu0 %881
  %884 = vset.pattern.permute.xlu0 2
  %885 = vperm.xlu0 %884, %v32
  %v886 = vpop.permute.xlu0 %885
  %888 = vset.pattern.permute.xlu0 2
  %889 = vperm.xlu0 %888, %v33
  %v890 = vpop.permute.xlu0 %889
  %892 = vset.pattern.permute.xlu0 2
  %893 = vperm.xlu0 %892, %v34
  %v894 = vpop.permute.xlu0 %893
  %896 = vset.pattern.permute.xlu0 2
  %897 = vperm.xlu0 %896, %v35
  %v898 = vpop.permute.xlu0 %897
  %900 = vset.pattern.permute.xlu0 2
  %901 = vperm.xlu0 %900, %v36
  %v902 = vpop.permute.xlu0 %901
  %904 = vset.pattern.permute.xlu0 2
  %905 = vperm.xlu0 %904, %v37
  %v906 = vpop.permute.xlu0 %905
  %908 = vset.pattern.permute.xlu0 2
  %909 = vperm.xlu0 %908, %v38
  %v910 = vpop.permute.xlu0 %909
  %912 = vset.pattern.permute.xlu0 2
  %913 = vperm.xlu0 %912, %v39
  %v914 = vpop.permute.xlu0 %913
  %916 = vset.pattern.permute.xlu0 2
  %917 = vperm.xlu0 %916, %v40
  %v918 = vpop.permute.xlu0 %917
  %920 = vset.pattern.permute.xlu0 2
  %921 = vperm.xlu0 %920, %v41
  %v922 = vpop.permute.xlu0 %921
  %924 = vset.pattern.permute.xlu0 2
  %925 = vperm.xlu0 %924, %v42
  %v926 = vpop.permute.xlu0 %925
  %928 = vset.pattern.permute.xlu0 2
  %929 = vperm.xlu0 %928, %v43
  %v930 = vpop.permute.xlu0 %929
  %932 = vset.pattern.permute.xlu0 2
  %933 = vperm.xlu0 %932, %v44
  %v934 = vpop.permute.xlu0 %933
  %936 = vset.pattern.permute.xlu0 2
  %937 = vperm.xlu0 %936, %v45
  %v938 = vpop.permute.xlu0 %937
  %940 = vset.pattern.permute.xlu0 2
  %941 = vperm.xlu0 %940, %v46
  %v942 = vpop.permute.xlu0 %941
  %944 = vset.pattern.permute.xlu0 2
  %945 = vperm.xlu0 %944, %v47
  %v946 = vpop.permute.xlu0 %945
  %948 = vset.pattern.permute.xlu0 2
  %949 = vperm.xlu0 %948, %v48
  %v950 = vpop.permute.xlu0 %949
  %952 = vset.pattern.permute.xlu0 2
  %953 = vperm.xlu0 %952, %v49
  %v954 = vpop.permute.xlu0 %953
  %956 = vset.pattern.permute.xlu0 2
  %957 = vperm.xlu0 %956, %v50
  %v958 = vpop.permute.xlu0 %957
  %960 = vset.pattern.permute.xlu0 2
  %961 = vperm.xlu0 %960, %v51
  %v962 = vpop.permute.xlu0 %961
  %964 = vset.pattern.permute.xlu0 2
  %965 = vperm.xlu0 %964, %v52
  %v966 = vpop.permute.xlu0 %965
  %968 = vset.pattern.permute.xlu0 2
  %969 = vperm.xlu0 %968, %v53
  %v970 = vpop.permute.xlu0 %969
  %972 = vset.pattern.permute.xlu0 2
  %973 = vperm.xlu0 %972, %v54
  %v974 = vpop.permute.xlu0 %973
  %976 = vset.pattern.permute.xlu0 2
  %977 = vperm.xlu0 %976, %v55
  %v978 = vpop.permute.xlu0 %977
  %980 = vset.pattern.permute.xlu0 2
  %981 = vperm.xlu0 %980, %v56
  %v982 = vpop.permute.xlu0 %981
  %984 = vset.pattern.permute.xlu0 2
  %985 = vperm.xlu0 %984, %v57
  %v986 = vpop.permute.xlu0 %985
  %988 = vset.pattern.permute.xlu0 2
  %989 = vperm.xlu0 %988, %v58
  %v990 = vpop.permute.xlu0 %989
  %992 = vset.pattern.permute.xlu0 2
  %993 = vperm.xlu0 %992, %v59
  %v994 = vpop.permute.xlu0 %993
  %996 = vset.pattern.permute.xlu0 2
  %997 = vperm.xlu0 %996, %v60
  %v998 = vpop.permute.xlu0 %997
  %1000 = vset.pattern.permute.xlu0 2
  %1001 = vperm.xlu0 %1000, %v61
  %v1002 = vpop.permute.xlu0 %1001
  %1004 = vset.pattern.permute.xlu0 2
  %1005 = vperm.xlu0 %1004, %v62
  %v1006 = vpop.permute.xlu0 %1005
  %1008 = vset.pattern.permute.xlu0 2
  %1009 = vperm.xlu0 %1008, %v63
  %v1010 = vpop.permute.xlu0 %1009
  %1012 = vset.pattern.permute.xlu0 2
  %1013 = vperm.xlu0 %1012, %v64
  %v1014 = vpop.permute.xlu0 %1013
  %1016 = vset.pattern.permute.xlu0 2
  %1017 = vperm.xlu0 %1016, %v65
  %v1018 = vpop.permute.xlu0 %1017
  %1020 = vset.pattern.permute.xlu0 2
  %1021 = vperm.xlu0 %1020, %v66
  %v1022 = vpop.permute.xlu0 %1021
  %1024 = vset.pattern.permute.xlu0 2
  %1025 = vperm.xlu0 %1024, %v67
  %v1026 = vpop.permute.xlu0 %1025
  %1028 = vset.pattern.permute.xlu0 2
  %1029 = vperm.xlu0 %1028, %v68
  %v1030 = vpop.permute.xlu0 %1029
  %1032 = vset.pattern.permute.xlu0 2
  %1033 = vperm.xlu0 %1032, %v69
  %v1034 = vpop.permute.xlu0 %1033
  %1036 = vset.pattern.permute.xlu0 2
  %1037 = vperm.xlu0 %1036, %v70
  %v1038 = vpop.permute.xlu0 %1037
  %1040 = vset.pattern.permute.xlu0 2
  %1041 = vperm.xlu0 %1040, %v71
  %v1042 = vpop.permute.xlu0 %1041
  %1044 = vset.pattern.permute.xlu0 2
  %1045 = vperm.xlu0 %1044, %v72
  %v1046 = vpop.permute.xlu0 %1045
  %1048 = vset.pattern.permute.xlu0 2
  %1049 = vperm.xlu0 %1048, %v73
  %v1050 = vpop.permute.xlu0 %1049
  %1052 = vset.pattern.permute.xlu0 2
  %1053 = vperm.xlu0 %1052, %v74
  %v1054 = vpop.permute.xlu0 %1053
  %1056 = vset.pattern.permute.xlu0 2
  %1057 = vperm.xlu0 %1056, %v75
  %v1058 = vpop.permute.xlu0 %1057
  %1060 = vset.pattern.permute.xlu0 2
  %1061 = vperm.xlu0 %1060, %v76
  %v1062 = vpop.permute.xlu0 %1061
  %1064 = vset.pattern.permute.xlu0 2
  %1065 = vperm.xlu0 %1064, %v77
  %v1066 = vpop.permute.xlu0 %1065
  %1068 = vset.pattern.permute.xlu0 2
  %1069 = vperm.xlu0 %1068, %v78
  %v1070 = vpop.permute.xlu0 %1069
  %1072 = vset.pattern.permute.xlu0 2
  %1073 = vperm.xlu0 %1072, %v79
  %v1074 = vpop.permute.xlu0 %1073
  %1076 = vset.pattern.permute.xlu0 2
  %1077 = vperm.xlu0 %1076, %v80
  %v1078 = vpop.permute.xlu0 %1077
  %1080 = vset.pattern.permute.xlu0 2
  %1081 = vperm.xlu0 %1080, %v81
  %v1082 = vpop.permute.xlu0 %1081
  %1084 = vset.pattern.permute.xlu0 2
  %1085 = vperm.xlu0 %1084, %v82
  %v1086 = vpop.permute.xlu0 %1085
  %1088 = vset.pattern.permute.xlu0 2
  %1089 = vperm.xlu0 %1088, %v83
  %v1090 = vpop.permute.xlu0 %1089
  %1092 = vset.pattern.permute.xlu0 2
  %1093 = vperm.xlu0 %1092, %v84
  %v1094 = vpop.permute.xlu0 %1093
  %1096 = vset.pattern.permute.xlu0 2
  %1097 = vperm.xlu0 %1096, %v85
  %v1098 = vpop.permute.xlu0 %1097
  %1100 = vset.pattern.permute.xlu0 2
  %1101 = vperm.xlu0 %1100, %v86
  %v1102 = vpop.permute.xlu0 %1101
  %1104 = vset.pattern.permute.xlu0 2
  %1105 = vperm.xlu0 %1104, %v87
  %v1106 = vpop.permute.xlu0 %1105
  %1108 = vset.pattern.permute.xlu0 2
  %1109 = vperm.xlu0 %1108, %v88
  %v1110 = vpop.permute.xlu0 %1109
  %1112 = vset.pattern.permute.xlu0 2
  %1113 = vperm.xlu0 %1112, %v89
  %v1114 = vpop.permute.xlu0 %1113
  %1116 = vset.pattern.permute.xlu0 2
  %1117 = vperm.xlu0 %1116, %v90
  %v1118 = vpop.permute.xlu0 %1117
  %1120 = vset.pattern.permute.xlu0 2
  %1121 = vperm.xlu0 %1120, %v91
  %v1122 = vpop.permute.xlu0 %1121
  %1124 = vset.pattern.permute.xlu0 2
  %1125 = vperm.xlu0 %1124, %v92
  %v1126 = vpop.permute.xlu0 %1125
  %v1128 = vlaneseq
  %v1129 = vshrl.u32 %v1128, 7
  %v1130 = vsub.s32 0, %v1129
  %v1131 = vrot.slane %v871, %v1130
  %v1132 = vmul.f32 %v874, %v1131
  %v1133 = vmul.f32 %v878, %v1131
  %v1134 = vmul.f32 %v882, %v1131
  %v1135 = vmul.f32 %v886, %v1131
  %v1136 = vmul.f32 %v890, %v1131
  %v1137 = vmul.f32 %v894, %v1131
  %v1138 = vmul.f32 %v898, %v1131
  %v1139 = vmul.f32 %v902, %v1131
  %v1140 = vmul.f32 %v906, %v1131
  %v1141 = vmul.f32 %v910, %v1131
  %v1142 = vmul.f32 %v914, %v1131
  %v1143 = vmul.f32 %v918, %v1131
  %v1144 = vmul.f32 %v922, %v1131
  %v1145 = vmul.f32 %v926, %v1131
  %v1146 = vmul.f32 %v930, %v1131
  %v1147 = vmul.f32 %v934, %v1131
  %v1148 = vmul.f32 %v938, %v1131
  %v1149 = vmul.f32 %v942, %v1131
  %v1150 = vmul.f32 %v946, %v1131
  %v1151 = vmul.f32 %v950, %v1131
  %v1152 = vmul.f32 %v954, %v1131
  %v1153 = vmul.f32 %v958, %v1131
  %v1154 = vmul.f32 %v962, %v1131
  %v1155 = vmul.f32 %v966, %v1131
  %v1156 = vmul.f32 %v970, %v1131
  %v1157 = vmul.f32 %v974, %v1131
  %v1158 = vmul.f32 %v978, %v1131
  %v1159 = vmul.f32 %v982, %v1131
  %v1160 = vmul.f32 %v986, %v1131
  %v1161 = vmul.f32 %v990, %v1131
  %v1162 = vmul.f32 %v994, %v1131
  %v1163 = vmul.f32 %v998, %v1131
  %v1164 = vmul.f32 %v1002, %v1131
  %v1165 = vmul.f32 %v1006, %v1131
  %v1166 = vmul.f32 %v1010, %v1131
  %v1167 = vmul.f32 %v1014, %v1131
  %v1168 = vmul.f32 %v1018, %v1131
  %v1169 = vmul.f32 %v1022, %v1131
  %v1170 = vmul.f32 %v1026, %v1131
  %v1171 = vmul.f32 %v1030, %v1131
  %v1172 = vmul.f32 %v1034, %v1131
  %v1173 = vmul.f32 %v1038, %v1131
  %v1174 = vmul.f32 %v1042, %v1131
  %v1175 = vmul.f32 %v1046, %v1131
  %v1176 = vmul.f32 %v1050, %v1131
  %v1177 = vmul.f32 %v1054, %v1131
  %v1178 = vmul.f32 %v1058, %v1131
  %v1179 = vmul.f32 %v1062, %v1131
  %v1180 = vmul.f32 %v1066, %v1131
  %v1181 = vmul.f32 %v1070, %v1131
  %v1182 = vmul.f32 %v1074, %v1131
  %v1183 = vmul.f32 %v1078, %v1131
  %v1184 = vmul.f32 %v1082, %v1131
  %v1185 = vmul.f32 %v1086, %v1131
  %v1186 = vmul.f32 %v1090, %v1131
  %v1187 = vmul.f32 %v1094, %v1131
  %v1188 = vmul.f32 %v1098, %v1131
  %v1189 = vmul.f32 %v1102, %v1131
  %v1190 = vmul.f32 %v1106, %v1131
  %v1191 = vmul.f32 %v1110, %v1131
  %v1192 = vmul.f32 %v1114, %v1131
  %v1193 = vmul.f32 %v1118, %v1131
  %v1194 = vmul.f32 %v1122, %v1131
  %v1195 = vmul.f32 %v1126, %v1131
  %v1196 = vadd.f32 %v807, %v1132
  %v1197 = vadd.f32 %v808, %v1133
  %v1198 = vadd.f32 %v809, %v1134
  %v1199 = vadd.f32 %v810, %v1135
  %v1200 = vadd.f32 %v811, %v1136
  %v1201 = vadd.f32 %v812, %v1137
  %v1202 = vadd.f32 %v813, %v1138
  %v1203 = vadd.f32 %v814, %v1139
  %v1204 = vadd.f32 %v815, %v1140
  %v1205 = vadd.f32 %v816, %v1141
  %v1206 = vadd.f32 %v817, %v1142
  %v1207 = vadd.f32 %v818, %v1143
  %v1208 = vadd.f32 %v819, %v1144
  %v1209 = vadd.f32 %v820, %v1145
  %v1210 = vadd.f32 %v821, %v1146
  %v1211 = vadd.f32 %v822, %v1147
  %v1212 = vadd.f32 %v823, %v1148
  %v1213 = vadd.f32 %v824, %v1149
  %v1214 = vadd.f32 %v825, %v1150
  %v1215 = vadd.f32 %v826, %v1151
  %v1216 = vadd.f32 %v827, %v1152
  %v1217 = vadd.f32 %v828, %v1153
  %v1218 = vadd.f32 %v829, %v1154
  %v1219 = vadd.f32 %v830, %v1155
  %v1220 = vadd.f32 %v831, %v1156
  %v1221 = vadd.f32 %v832, %v1157
  %v1222 = vadd.f32 %v833, %v1158
  %v1223 = vadd.f32 %v834, %v1159
  %v1224 = vadd.f32 %v835, %v1160
  %v1225 = vadd.f32 %v836, %v1161
  %v1226 = vadd.f32 %v837, %v1162
  %v1227 = vadd.f32 %v838, %v1163
  %v1228 = vadd.f32 %v839, %v1164
  %v1229 = vadd.f32 %v840, %v1165
  %v1230 = vadd.f32 %v841, %v1166
  %v1231 = vadd.f32 %v842, %v1167
  %v1232 = vadd.f32 %v843, %v1168
  %v1233 = vadd.f32 %v844, %v1169
  %v1234 = vadd.f32 %v845, %v1170
  %v1235 = vadd.f32 %v846, %v1171
  %v1236 = vadd.f32 %v847, %v1172
  %v1237 = vadd.f32 %v848, %v1173
  %v1238 = vadd.f32 %v849, %v1174
  %v1239 = vadd.f32 %v850, %v1175
  %v1240 = vadd.f32 %v851, %v1176
  %v1241 = vadd.f32 %v852, %v1177
  %v1242 = vadd.f32 %v853, %v1178
  %v1243 = vadd.f32 %v854, %v1179
  %v1244 = vadd.f32 %v855, %v1180
  %v1245 = vadd.f32 %v856, %v1181
  %v1246 = vadd.f32 %v857, %v1182
  %v1247 = vadd.f32 %v858, %v1183
  %v1248 = vadd.f32 %v859, %v1184
  %v1249 = vadd.f32 %v860, %v1185
  %v1250 = vadd.f32 %v861, %v1186
  %v1251 = vadd.f32 %v862, %v1187
  %v1252 = vadd.f32 %v863, %v1188
  %v1253 = vadd.f32 %v864, %v1189
  %v1254 = vadd.f32 %v865, %v1190
  %v1255 = vadd.f32 %v866, %v1191
  %v1256 = vadd.f32 %v867, %v1192
  %v1257 = vadd.f32 %v868, %v1193
  %v1258 = vadd.f32 %v869, %v1194
  %v1259 = vadd.f32 %v870, %v1195
  %v1260 = vld [vmem:[%s2] sm:$0x1]
  %v1262 = vlaneseq
  %v1263 = vshrl.u32 %v1262, 7
  %v1264 = vsub.s32 0, %v1263
  %v1265 = vrot.slane %v1260, %v1264
  %v1267 = vadd.f32 %v1196, %v1265
  %v1268 = vadd.f32 %v1197, %v1265
  %v1269 = vadd.f32 %v1198, %v1265
  %v1270 = vadd.f32 %v1199, %v1265
  %v1271 = vadd.f32 %v1200, %v1265
  %v1272 = vadd.f32 %v1201, %v1265
  %v1273 = vadd.f32 %v1202, %v1265
  %v1274 = vadd.f32 %v1203, %v1265
  %v1275 = vadd.f32 %v1204, %v1265
  %v1276 = vadd.f32 %v1205, %v1265
  %v1277 = vadd.f32 %v1206, %v1265
  %v1278 = vadd.f32 %v1207, %v1265
  %v1279 = vadd.f32 %v1208, %v1265
  %v1280 = vadd.f32 %v1209, %v1265
  %v1281 = vadd.f32 %v1210, %v1265
  %v1282 = vadd.f32 %v1211, %v1265
  %v1283 = vadd.f32 %v1212, %v1265
  %v1284 = vadd.f32 %v1213, %v1265
  %v1285 = vadd.f32 %v1214, %v1265
  %v1286 = vadd.f32 %v1215, %v1265
  %v1287 = vadd.f32 %v1216, %v1265
  %v1288 = vadd.f32 %v1217, %v1265
  %v1289 = vadd.f32 %v1218, %v1265
  %v1290 = vadd.f32 %v1219, %v1265
  %v1291 = vadd.f32 %v1220, %v1265
  %v1292 = vadd.f32 %v1221, %v1265
  %v1293 = vadd.f32 %v1222, %v1265
  %v1294 = vadd.f32 %v1223, %v1265
  %v1295 = vadd.f32 %v1224, %v1265
  %v1296 = vadd.f32 %v1225, %v1265
  %v1297 = vadd.f32 %v1226, %v1265
  %v1298 = vadd.f32 %v1227, %v1265
  %v1299 = vadd.f32 %v1228, %v1265
  %v1300 = vadd.f32 %v1229, %v1265
  %v1301 = vadd.f32 %v1230, %v1265
  %v1302 = vadd.f32 %v1231, %v1265
  %v1303 = vadd.f32 %v1232, %v1265
  %v1304 = vadd.f32 %v1233, %v1265
  %v1305 = vadd.f32 %v1234, %v1265
  %v1306 = vadd.f32 %v1235, %v1265
  %v1307 = vadd.f32 %v1236, %v1265
  %v1308 = vadd.f32 %v1237, %v1265
  %v1309 = vadd.f32 %v1238, %v1265
  %v1310 = vadd.f32 %v1239, %v1265
  %v1311 = vadd.f32 %v1240, %v1265
  %v1312 = vadd.f32 %v1241, %v1265
  %v1313 = vadd.f32 %v1242, %v1265
  %v1314 = vadd.f32 %v1243, %v1265
  %v1315 = vadd.f32 %v1244, %v1265
  %v1316 = vadd.f32 %v1245, %v1265
  %v1317 = vadd.f32 %v1246, %v1265
  %v1318 = vadd.f32 %v1247, %v1265
  %v1319 = vadd.f32 %v1248, %v1265
  %v1320 = vadd.f32 %v1249, %v1265
  %v1321 = vadd.f32 %v1250, %v1265
  %v1322 = vadd.f32 %v1251, %v1265
  %v1323 = vadd.f32 %v1252, %v1265
  %v1324 = vadd.f32 %v1253, %v1265
  %v1325 = vadd.f32 %v1254, %v1265
  %v1326 = vadd.f32 %v1255, %v1265
  %v1327 = vadd.f32 %v1256, %v1265
  %v1328 = vadd.f32 %v1257, %v1265
  %v1329 = vadd.f32 %v1258, %v1265
  %v1330 = vadd.f32 %v1259, %v1265
  %vm1331 = vcmp.ge.f32.partialorder %v1267, 0.0
  %vm1332 = vcmp.ge.f32.partialorder %v1268, 0.0
  %vm1333 = vcmp.ge.f32.partialorder %v1269, 0.0
  %vm1334 = vcmp.ge.f32.partialorder %v1270, 0.0
  %vm1335 = vcmp.ge.f32.partialorder %v1271, 0.0
  %vm1336 = vcmp.ge.f32.partialorder %v1272, 0.0
  %vm1337 = vcmp.ge.f32.partialorder %v1273, 0.0
  %vm1338 = vcmp.ge.f32.partialorder %v1274, 0.0
  %vm1339 = vcmp.ge.f32.partialorder %v1275, 0.0
  %vm1340 = vcmp.ge.f32.partialorder %v1276, 0.0
  %vm1341 = vcmp.ge.f32.partialorder %v1277, 0.0
  %vm1342 = vcmp.ge.f32.partialorder %v1278, 0.0
  %vm1343 = vcmp.ge.f32.partialorder %v1279, 0.0
  %vm1344 = vcmp.ge.f32.partialorder %v1280, 0.0
  %vm1345 = vcmp.ge.f32.partialorder %v1281, 0.0
  %vm1346 = vcmp.ge.f32.partialorder %v1282, 0.0
  %vm1347 = vcmp.ge.f32.partialorder %v1283, 0.0
  %vm1348 = vcmp.ge.f32.partialorder %v1284, 0.0
  %vm1349 = vcmp.ge.f32.partialorder %v1285, 0.0
  %vm1350 = vcmp.ge.f32.partialorder %v1286, 0.0
  %vm1351 = vcmp.ge.f32.partialorder %v1287, 0.0
  %vm1352 = vcmp.ge.f32.partialorder %v1288, 0.0
  %vm1353 = vcmp.ge.f32.partialorder %v1289, 0.0
  %vm1354 = vcmp.ge.f32.partialorder %v1290, 0.0
  %vm1355 = vcmp.ge.f32.partialorder %v1291, 0.0
  %vm1356 = vcmp.ge.f32.partialorder %v1292, 0.0
  %vm1357 = vcmp.ge.f32.partialorder %v1293, 0.0
  %vm1358 = vcmp.ge.f32.partialorder %v1294, 0.0
  %vm1359 = vcmp.ge.f32.partialorder %v1295, 0.0
  %vm1360 = vcmp.ge.f32.partialorder %v1296, 0.0
  %vm1361 = vcmp.ge.f32.partialorder %v1297, 0.0
  %vm1362 = vcmp.ge.f32.partialorder %v1298, 0.0
  %vm1363 = vcmp.ge.f32.partialorder %v1299, 0.0
  %vm1364 = vcmp.ge.f32.partialorder %v1300, 0.0
  %vm1365 = vcmp.ge.f32.partialorder %v1301, 0.0
  %vm1366 = vcmp.ge.f32.partialorder %v1302, 0.0
  %vm1367 = vcmp.ge.f32.partialorder %v1303, 0.0
  %vm1368 = vcmp.ge.f32.partialorder %v1304, 0.0
  %vm1369 = vcmp.ge.f32.partialorder %v1305, 0.0
  %vm1370 = vcmp.ge.f32.partialorder %v1306, 0.0
  %vm1371 = vcmp.ge.f32.partialorder %v1307, 0.0
  %vm1372 = vcmp.ge.f32.partialorder %v1308, 0.0
  %vm1373 = vcmp.ge.f32.partialorder %v1309, 0.0
  %vm1374 = vcmp.ge.f32.partialorder %v1310, 0.0
  %vm1375 = vcmp.ge.f32.partialorder %v1311, 0.0
  %vm1376 = vcmp.ge.f32.partialorder %v1312, 0.0
  %vm1377 = vcmp.ge.f32.partialorder %v1313, 0.0
  %vm1378 = vcmp.ge.f32.partialorder %v1314, 0.0
  %vm1379 = vcmp.ge.f32.partialorder %v1315, 0.0
  %vm1380 = vcmp.ge.f32.partialorder %v1316, 0.0
  %vm1381 = vcmp.ge.f32.partialorder %v1317, 0.0
  %vm1382 = vcmp.ge.f32.partialorder %v1318, 0.0
  %vm1383 = vcmp.ge.f32.partialorder %v1319, 0.0
  %vm1384 = vcmp.ge.f32.partialorder %v1320, 0.0
  %vm1385 = vcmp.ge.f32.partialorder %v1321, 0.0
  %vm1386 = vcmp.ge.f32.partialorder %v1322, 0.0
  %vm1387 = vcmp.ge.f32.partialorder %v1323, 0.0
  %vm1388 = vcmp.ge.f32.partialorder %v1324, 0.0
  %vm1389 = vcmp.ge.f32.partialorder %v1325, 0.0
  %vm1390 = vcmp.ge.f32.partialorder %v1326, 0.0
  %vm1391 = vcmp.ge.f32.partialorder %v1327, 0.0
  %vm1392 = vcmp.ge.f32.partialorder %v1328, 0.0
  %vm1393 = vcmp.ge.f32.partialorder %v1329, 0.0
  %vm1394 = vcmp.ge.f32.partialorder %v1330, 0.0
  %v1395 = vmul.f32 %v1267, 0.01
  %v1396 = vmul.f32 %v1268, 0.01
  %v1397 = vmul.f32 %v1269, 0.01
  %v1398 = vmul.f32 %v1270, 0.01
  %v1399 = vmul.f32 %v1271, 0.01
  %v1400 = vmul.f32 %v1272, 0.01
  %v1401 = vmul.f32 %v1273, 0.01
  %v1402 = vmul.f32 %v1274, 0.01
  %v1403 = vmul.f32 %v1275, 0.01
  %v1404 = vmul.f32 %v1276, 0.01
  %v1405 = vmul.f32 %v1277, 0.01
  %v1406 = vmul.f32 %v1278, 0.01
  %v1407 = vmul.f32 %v1279, 0.01
  %v1408 = vmul.f32 %v1280, 0.01
  %v1409 = vmul.f32 %v1281, 0.01
  %v1410 = vmul.f32 %v1282, 0.01
  %v1411 = vmul.f32 %v1283, 0.01
  %v1412 = vmul.f32 %v1284, 0.01
  %v1413 = vmul.f32 %v1285, 0.01
  %v1414 = vmul.f32 %v1286, 0.01
  %v1415 = vmul.f32 %v1287, 0.01
  %v1416 = vmul.f32 %v1288, 0.01
  %v1417 = vmul.f32 %v1289, 0.01
  %v1418 = vmul.f32 %v1290, 0.01
  %v1419 = vmul.f32 %v1291, 0.01
  %v1420 = vmul.f32 %v1292, 0.01
  %v1421 = vmul.f32 %v1293, 0.01
  %v1422 = vmul.f32 %v1294, 0.01
  %v1423 = vmul.f32 %v1295, 0.01
  %v1424 = vmul.f32 %v1296, 0.01
  %v1425 = vmul.f32 %v1297, 0.01
  %v1426 = vmul.f32 %v1298, 0.01
  %v1427 = vmul.f32 %v1299, 0.01
  %v1428 = vmul.f32 %v1300, 0.01
  %v1429 = vmul.f32 %v1301, 0.01
  %v1430 = vmul.f32 %v1302, 0.01
  %v1431 = vmul.f32 %v1303, 0.01
  %v1432 = vmul.f32 %v1304, 0.01
  %v1433 = vmul.f32 %v1305, 0.01
  %v1434 = vmul.f32 %v1306, 0.01
  %v1435 = vmul.f32 %v1307, 0.01
  %v1436 = vmul.f32 %v1308, 0.01
  %v1437 = vmul.f32 %v1309, 0.01
  %v1438 = vmul.f32 %v1310, 0.01
  %v1439 = vmul.f32 %v1311, 0.01
  %v1440 = vmul.f32 %v1312, 0.01
  %v1441 = vmul.f32 %v1313, 0.01
  %v1442 = vmul.f32 %v1314, 0.01
  %v1443 = vmul.f32 %v1315, 0.01
  %v1444 = vmul.f32 %v1316, 0.01
  %v1445 = vmul.f32 %v1317, 0.01
  %v1446 = vmul.f32 %v1318, 0.01
  %v1447 = vmul.f32 %v1319, 0.01
  %v1448 = vmul.f32 %v1320, 0.01
  %v1449 = vmul.f32 %v1321, 0.01
  %v1450 = vmul.f32 %v1322, 0.01
  %v1451 = vmul.f32 %v1323, 0.01
  %v1452 = vmul.f32 %v1324, 0.01
  %v1453 = vmul.f32 %v1325, 0.01
  %v1454 = vmul.f32 %v1326, 0.01
  %v1455 = vmul.f32 %v1327, 0.01
  %v1456 = vmul.f32 %v1328, 0.01
  %v1457 = vmul.f32 %v1329, 0.01
  %v1458 = vmul.f32 %v1330, 0.01
  %v1459 = vsel %vm1331, %v1267, %v1395
  %v1460 = vsel %vm1332, %v1268, %v1396
  %v1461 = vsel %vm1333, %v1269, %v1397
  %v1462 = vsel %vm1334, %v1270, %v1398
  %v1463 = vsel %vm1335, %v1271, %v1399
  %v1464 = vsel %vm1336, %v1272, %v1400
  %v1465 = vsel %vm1337, %v1273, %v1401
  %v1466 = vsel %vm1338, %v1274, %v1402
  %v1467 = vsel %vm1339, %v1275, %v1403
  %v1468 = vsel %vm1340, %v1276, %v1404
  %v1469 = vsel %vm1341, %v1277, %v1405
  %v1470 = vsel %vm1342, %v1278, %v1406
  %v1471 = vsel %vm1343, %v1279, %v1407
  %v1472 = vsel %vm1344, %v1280, %v1408
  %v1473 = vsel %vm1345, %v1281, %v1409
  %v1474 = vsel %vm1346, %v1282, %v1410
  %v1475 = vsel %vm1347, %v1283, %v1411
  %v1476 = vsel %vm1348, %v1284, %v1412
  %v1477 = vsel %vm1349, %v1285, %v1413
  %v1478 = vsel %vm1350, %v1286, %v1414
  %v1479 = vsel %vm1351, %v1287, %v1415
  %v1480 = vsel %vm1352, %v1288, %v1416
  %v1481 = vsel %vm1353, %v1289, %v1417
  %v1482 = vsel %vm1354, %v1290, %v1418
  %v1483 = vsel %vm1355, %v1291, %v1419
  %v1484 = vsel %vm1356, %v1292, %v1420
  %v1485 = vsel %vm1357, %v1293, %v1421
  %v1486 = vsel %vm1358, %v1294, %v1422
  %v1487 = vsel %vm1359, %v1295, %v1423
  %v1488 = vsel %vm1360, %v1296, %v1424
  %v1489 = vsel %vm1361, %v1297, %v1425
  %v1490 = vsel %vm1362, %v1298, %v1426
  %v1491 = vsel %vm1363, %v1299, %v1427
  %v1492 = vsel %vm1364, %v1300, %v1428
  %v1493 = vsel %vm1365, %v1301, %v1429
  %v1494 = vsel %vm1366, %v1302, %v1430
  %v1495 = vsel %vm1367, %v1303, %v1431
  %v1496 = vsel %vm1368, %v1304, %v1432
  %v1497 = vsel %vm1369, %v1305, %v1433
  %v1498 = vsel %vm1370, %v1306, %v1434
  %v1499 = vsel %vm1371, %v1307, %v1435
  %v1500 = vsel %vm1372, %v1308, %v1436
  %v1501 = vsel %vm1373, %v1309, %v1437
  %v1502 = vsel %vm1374, %v1310, %v1438
  %v1503 = vsel %vm1375, %v1311, %v1439
  %v1504 = vsel %vm1376, %v1312, %v1440
  %v1505 = vsel %vm1377, %v1313, %v1441
  %v1506 = vsel %vm1378, %v1314, %v1442
  %v1507 = vsel %vm1379, %v1315, %v1443
  %v1508 = vsel %vm1380, %v1316, %v1444
  %v1509 = vsel %vm1381, %v1317, %v1445
  %v1510 = vsel %vm1382, %v1318, %v1446
  %v1511 = vsel %vm1383, %v1319, %v1447
  %v1512 = vsel %vm1384, %v1320, %v1448
  %v1513 = vsel %vm1385, %v1321, %v1449
  %v1514 = vsel %vm1386, %v1322, %v1450
  %v1515 = vsel %vm1387, %v1323, %v1451
  %v1516 = vsel %vm1388, %v1324, %v1452
  %v1517 = vsel %vm1389, %v1325, %v1453
  %v1518 = vsel %vm1390, %v1326, %v1454
  %v1519 = vsel %vm1391, %v1327, %v1455
  %v1520 = vsel %vm1392, %v1328, %v1456
  %v1521 = vsel %vm1393, %v1329, %v1457
  %v1522 = vsel %vm1394, %v1330, %v1458
  %v1523 = vpack.c.bf16 %v1460, %v1459
  %v1524 = vpack.c.bf16 %v1462, %v1461
  %v1525 = vpack.c.bf16 %v1464, %v1463
  %v1526 = vpack.c.bf16 %v1466, %v1465
  %v1531 = vunpack.c.l.b16 %v1523
  %v1532 = vunpack.c.h.b16 %v1523
  %v1533 = vunpack.c.l.b16 %v1524
  %v1534 = vunpack.c.h.b16 %v1524
  %v1535 = vunpack.c.l.b16 %v1525
  %v1536 = vunpack.c.h.b16 %v1525
  %v1537 = vunpack.c.l.b16 %v1526
  %v1538 = vunpack.c.h.b16 %v1526
  %v1539 = vpack.c.b16 %v1531, %v1531
  %v1540 = vpack.c.b16 %v1532, %v1532
  %v1541 = vpack.c.b16 %v1533, %v1533
  %v1542 = vpack.c.b16 %v1534, %v1534
  %v1543 = vpack.c.b16 %v1535, %v1535
  %v1544 = vpack.c.b16 %v1536, %v1536
  %v1545 = vpack.c.b16 %v1537, %v1537
  %v1546 = vpack.c.b16 %v1538, %v1538
  %vm1555 = vcmask 257024
  %1556 = vst.msk [vmem:[#allocation2] sm:$0xf] %vm1555, %v1539
  %1557 = vst.msk [vmem:[#allocation2 + $0x4] sm:$0xf] %vm1555, %v1540
  %1558 = vst.msk [vmem:[#allocation2 + $0x8] sm:$0xf] %vm1555, %v1541
  %1559 = vst.msk [vmem:[#allocation2 + $0xc] sm:$0xf] %vm1555, %v1542
  %1560 = vst.msk [vmem:[#allocation2 + $0x10] sm:$0xf] %vm1555, %v1543
  %1561 = vst.msk [vmem:[#allocation2 + $0x14] sm:$0xf] %vm1555, %v1544
  %1562 = vst.msk [vmem:[#allocation2 + $0x18] sm:$0xf] %vm1555, %v1545
  %1563 = vst.msk [vmem:[#allocation2 + $0x1c] sm:$0xf] %vm1555, %v1546
  %v1564 = vpack.c.bf16 %v1468, %v1467
  %v1565 = vpack.c.bf16 %v1470, %v1469
  %v1566 = vpack.c.bf16 %v1472, %v1471
  %v1567 = vpack.c.bf16 %v1474, %v1473
  %v1572 = vunpack.c.l.b16 %v1564
  %v1573 = vunpack.c.h.b16 %v1564
  %v1574 = vunpack.c.l.b16 %v1565
  %v1575 = vunpack.c.h.b16 %v1565
  %v1576 = vunpack.c.l.b16 %v1566
  %v1577 = vunpack.c.h.b16 %v1566
  %v1578 = vunpack.c.l.b16 %v1567
  %v1579 = vunpack.c.h.b16 %v1567
  %v1580 = vpack.c.b16 %v1572, %v1572
  %v1581 = vpack.c.b16 %v1573, %v1573
  %v1582 = vpack.c.b16 %v1574, %v1574
  %v1583 = vpack.c.b16 %v1575, %v1575
  %v1584 = vpack.c.b16 %v1576, %v1576
  %v1585 = vpack.c.b16 %v1577, %v1577
  %v1586 = vpack.c.b16 %v1578, %v1578
  %v1587 = vpack.c.b16 %v1579, %v1579
  %1588 = vrot.lane.b32.xlu0 %v1580, 32
  %v1589 = vpop.permute.xlu0 %1588
  %1590 = vrot.lane.b32.xlu0 %v1581, 32
  %v1591 = vpop.permute.xlu0 %1590
  %1592 = vrot.lane.b32.xlu0 %v1582, 32
  %v1593 = vpop.permute.xlu0 %1592
  %1594 = vrot.lane.b32.xlu0 %v1583, 32
  %v1595 = vpop.permute.xlu0 %1594
  %1596 = vrot.lane.b32.xlu0 %v1584, 32
  %v1597 = vpop.permute.xlu0 %1596
  %1598 = vrot.lane.b32.xlu0 %v1585, 32
  %v1599 = vpop.permute.xlu0 %1598
  %1600 = vrot.lane.b32.xlu0 %v1586, 32
  %v1601 = vpop.permute.xlu0 %1600
  %1602 = vrot.lane.b32.xlu0 %v1587, 32
  %v1603 = vpop.permute.xlu0 %1602
  %vm1612 = vcmask 519424
  %1613 = vst.msk [vmem:[#allocation2] sm:$0xf] %vm1612, %v1589
  %1614 = vst.msk [vmem:[#allocation2 + $0x4] sm:$0xf] %vm1612, %v1591
  %1615 = vst.msk [vmem:[#allocation2 + $0x8] sm:$0xf] %vm1612, %v1593
  %1616 = vst.msk [vmem:[#allocation2 + $0xc] sm:$0xf] %vm1612, %v1595
  %1617 = vst.msk [vmem:[#allocation2 + $0x10] sm:$0xf] %vm1612, %v1597
  %1618 = vst.msk [vmem:[#allocation2 + $0x14] sm:$0xf] %vm1612, %v1599
  %1619 = vst.msk [vmem:[#allocation2 + $0x18] sm:$0xf] %vm1612, %v1601
  %1620 = vst.msk [vmem:[#allocation2 + $0x1c] sm:$0xf] %vm1612, %v1603
  %v1621 = vpack.c.bf16 %v1476, %v1475
  %v1622 = vpack.c.bf16 %v1478, %v1477
  %v1623 = vpack.c.bf16 %v1480, %v1479
  %v1624 = vpack.c.bf16 %v1482, %v1481
  %v1629 = vunpack.c.l.b16 %v1621
  %v1630 = vunpack.c.h.b16 %v1621
  %v1631 = vunpack.c.l.b16 %v1622
  %v1632 = vunpack.c.h.b16 %v1622
  %v1633 = vunpack.c.l.b16 %v1623
  %v1634 = vunpack.c.h.b16 %v1623
  %v1635 = vunpack.c.l.b16 %v1624
  %v1636 = vunpack.c.h.b16 %v1624
  %v1637 = vpack.c.b16 %v1629, %v1629
  %v1638 = vpack.c.b16 %v1630, %v1630
  %v1639 = vpack.c.b16 %v1631, %v1631
  %v1640 = vpack.c.b16 %v1632, %v1632
  %v1641 = vpack.c.b16 %v1633, %v1633
  %v1642 = vpack.c.b16 %v1634, %v1634
  %v1643 = vpack.c.b16 %v1635, %v1635
  %v1644 = vpack.c.b16 %v1636, %v1636
  %1645 = vrot.lane.b32.xlu0 %v1637, 64
  %v1646 = vpop.permute.xlu0 %1645
  %1647 = vrot.lane.b32.xlu0 %v1638, 64
  %v1648 = vpop.permute.xlu0 %1647
  %1649 = vrot.lane.b32.xlu0 %v1639, 64
  %v1650 = vpop.permute.xlu0 %1649
  %1651 = vrot.lane.b32.xlu0 %v1640, 64
  %v1652 = vpop.permute.xlu0 %1651
  %1653 = vrot.lane.b32.xlu0 %v1641, 64
  %v1654 = vpop.permute.xlu0 %1653
  %1655 = vrot.lane.b32.xlu0 %v1642, 64
  %v1656 = vpop.permute.xlu0 %1655
  %1657 = vrot.lane.b32.xlu0 %v1643, 64
  %v1658 = vpop.permute.xlu0 %1657
  %1659 = vrot.lane.b32.xlu0 %v1644, 64
  %v1660 = vpop.permute.xlu0 %1659
  %vm1669 = vcmask 781824
  %1670 = vst.msk [vmem:[#allocation2] sm:$0xf] %vm1669, %v1646
  %1671 = vst.msk [vmem:[#allocation2 + $0x4] sm:$0xf] %vm1669, %v1648
  %1672 = vst.msk [vmem:[#allocation2 + $0x8] sm:$0xf] %vm1669, %v1650
  %1673 = vst.msk [vmem:[#allocation2 + $0xc] sm:$0xf] %vm1669, %v1652
  %1674 = vst.msk [vmem:[#allocation2 + $0x10] sm:$0xf] %vm1669, %v1654
  %1675 = vst.msk [vmem:[#allocation2 + $0x14] sm:$0xf] %vm1669, %v1656
  %1676 = vst.msk [vmem:[#allocation2 + $0x18] sm:$0xf] %vm1669, %v1658
  %1677 = vst.msk [vmem:[#allocation2 + $0x1c] sm:$0xf] %vm1669, %v1660
  %v1678 = vpack.c.bf16 %v1484, %v1483
  %v1679 = vpack.c.bf16 %v1486, %v1485
  %v1680 = vpack.c.bf16 %v1488, %v1487
  %v1681 = vpack.c.bf16 %v1490, %v1489
  %v1686 = vunpack.c.l.b16 %v1678
  %v1687 = vunpack.c.h.b16 %v1678
  %v1688 = vunpack.c.l.b16 %v1679
  %v1689 = vunpack.c.h.b16 %v1679
  %v1690 = vunpack.c.l.b16 %v1680
  %v1691 = vunpack.c.h.b16 %v1680
  %v1692 = vunpack.c.l.b16 %v1681
  %v1693 = vunpack.c.h.b16 %v1681
  %v1694 = vpack.c.b16 %v1686, %v1686
  %v1695 = vpack.c.b16 %v1687, %v1687
  %v1696 = vpack.c.b16 %v1688, %v1688
  %v1697 = vpack.c.b16 %v1689, %v1689
  %v1698 = vpack.c.b16 %v1690, %v1690
  %v1699 = vpack.c.b16 %v1691, %v1691
  %v1700 = vpack.c.b16 %v1692, %v1692
  %v1701 = vpack.c.b16 %v1693, %v1693
  %1702 = vrot.lane.b32.xlu0 %v1694, 96
  %v1703 = vpop.permute.xlu0 %1702
  %1704 = vrot.lane.b32.xlu0 %v1695, 96
  %v1705 = vpop.permute.xlu0 %1704
  %1706 = vrot.lane.b32.xlu0 %v1696, 96
  %v1707 = vpop.permute.xlu0 %1706
  %1708 = vrot.lane.b32.xlu0 %v1697, 96
  %v1709 = vpop.permute.xlu0 %1708
  %1710 = vrot.lane.b32.xlu0 %v1698, 96
  %v1711 = vpop.permute.xlu0 %1710
  %1712 = vrot.lane.b32.xlu0 %v1699, 96
  %v1713 = vpop.permute.xlu0 %1712
  %1714 = vrot.lane.b32.xlu0 %v1700, 96
  %v1715 = vpop.permute.xlu0 %1714
  %1716 = vrot.lane.b32.xlu0 %v1701, 96
  %v1717 = vpop.permute.xlu0 %1716
  %vm1726 = vcmask 1044224
  %1727 = vst.msk [vmem:[#allocation2] sm:$0xf] %vm1726, %v1703
  %1728 = vst.msk [vmem:[#allocation2 + $0x4] sm:$0xf] %vm1726, %v1705
  %1729 = vst.msk [vmem:[#allocation2 + $0x8] sm:$0xf] %vm1726, %v1707
  %1730 = vst.msk [vmem:[#allocation2 + $0xc] sm:$0xf] %vm1726, %v1709
  %1731 = vst.msk [vmem:[#allocation2 + $0x10] sm:$0xf] %vm1726, %v1711
  %1732 = vst.msk [vmem:[#allocation2 + $0x14] sm:$0xf] %vm1726, %v1713
  %1733 = vst.msk [vmem:[#allocation2 + $0x18] sm:$0xf] %vm1726, %v1715
  %1734 = vst.msk [vmem:[#allocation2 + $0x1c] sm:$0xf] %vm1726, %v1717
  %v1735 = vpack.c.bf16 %v1492, %v1491
  %v1736 = vpack.c.bf16 %v1494, %v1493
  %v1737 = vpack.c.bf16 %v1496, %v1495
  %v1738 = vpack.c.bf16 %v1498, %v1497
  %v1743 = vunpack.c.l.b16 %v1735
  %v1744 = vunpack.c.h.b16 %v1735
  %v1745 = vunpack.c.l.b16 %v1736
  %v1746 = vunpack.c.h.b16 %v1736
  %v1747 = vunpack.c.l.b16 %v1737
  %v1748 = vunpack.c.h.b16 %v1737
  %v1749 = vunpack.c.l.b16 %v1738
  %v1750 = vunpack.c.h.b16 %v1738
  %v1751 = vpack.c.b16 %v1743, %v1743
  %v1752 = vpack.c.b16 %v1744, %v1744
  %v1753 = vpack.c.b16 %v1745, %v1745
  %v1754 = vpack.c.b16 %v1746, %v1746
  %v1755 = vpack.c.b16 %v1747, %v1747
  %v1756 = vpack.c.b16 %v1748, %v1748
  %v1757 = vpack.c.b16 %v1749, %v1749
  %v1758 = vpack.c.b16 %v1750, %v1750
  %1767 = vst.msk [vmem:[#allocation2 + $0x20] sm:$0xf] %vm1555, %v1751
  %1768 = vst.msk [vmem:[#allocation2 + $0x24] sm:$0xf] %vm1555, %v1752
  %1769 = vst.msk [vmem:[#allocation2 + $0x28] sm:$0xf] %vm1555, %v1753
  %1770 = vst.msk [vmem:[#allocation2 + $0x2c] sm:$0xf] %vm1555, %v1754
  %1771 = vst.msk [vmem:[#allocation2 + $0x30] sm:$0xf] %vm1555, %v1755
  %1772 = vst.msk [vmem:[#allocation2 + $0x34] sm:$0xf] %vm1555, %v1756
  %1773 = vst.msk [vmem:[#allocation2 + $0x38] sm:$0xf] %vm1555, %v1757
  %1774 = vst.msk [vmem:[#allocation2 + $0x3c] sm:$0xf] %vm1555, %v1758
  %v1775 = vpack.c.bf16 %v1500, %v1499
  %v1776 = vpack.c.bf16 %v1502, %v1501
  %v1777 = vpack.c.bf16 %v1504, %v1503
  %v1778 = vpack.c.bf16 %v1506, %v1505
  %v1783 = vunpack.c.l.b16 %v1775
  %v1784 = vunpack.c.h.b16 %v1775
  %v1785 = vunpack.c.l.b16 %v1776
  %v1786 = vunpack.c.h.b16 %v1776
  %v1787 = vunpack.c.l.b16 %v1777
  %v1788 = vunpack.c.h.b16 %v1777
  %v1789 = vunpack.c.l.b16 %v1778
  %v1790 = vunpack.c.h.b16 %v1778
  %v1791 = vpack.c.b16 %v1783, %v1783
  %v1792 = vpack.c.b16 %v1784, %v1784
  %v1793 = vpack.c.b16 %v1785, %v1785
  %v1794 = vpack.c.b16 %v1786, %v1786
  %v1795 = vpack.c.b16 %v1787, %v1787
  %v1796 = vpack.c.b16 %v1788, %v1788
  %v1797 = vpack.c.b16 %v1789, %v1789
  %v1798 = vpack.c.b16 %v1790, %v1790
  %1799 = vrot.lane.b32.xlu0 %v1791, 32
  %v1800 = vpop.permute.xlu0 %1799
  %1801 = vrot.lane.b32.xlu0 %v1792, 32
  %v1802 = vpop.permute.xlu0 %1801
  %1803 = vrot.lane.b32.xlu0 %v1793, 32
  %v1804 = vpop.permute.xlu0 %1803
  %1805 = vrot.lane.b32.xlu0 %v1794, 32
  %v1806 = vpop.permute.xlu0 %1805
  %1807 = vrot.lane.b32.xlu0 %v1795, 32
  %v1808 = vpop.permute.xlu0 %1807
  %1809 = vrot.lane.b32.xlu0 %v1796, 32
  %v1810 = vpop.permute.xlu0 %1809
  %1811 = vrot.lane.b32.xlu0 %v1797, 32
  %v1812 = vpop.permute.xlu0 %1811
  %1813 = vrot.lane.b32.xlu0 %v1798, 32
  %v1814 = vpop.permute.xlu0 %1813
  %1823 = vst.msk [vmem:[#allocation2 + $0x20] sm:$0xf] %vm1612, %v1800
  %1824 = vst.msk [vmem:[#allocation2 + $0x24] sm:$0xf] %vm1612, %v1802
  %1825 = vst.msk [vmem:[#allocation2 + $0x28] sm:$0xf] %vm1612, %v1804
  %1826 = vst.msk [vmem:[#allocation2 + $0x2c] sm:$0xf] %vm1612, %v1806
  %1827 = vst.msk [vmem:[#allocation2 + $0x30] sm:$0xf] %vm1612, %v1808
  %1828 = vst.msk [vmem:[#allocation2 + $0x34] sm:$0xf] %vm1612, %v1810
  %1829 = vst.msk [vmem:[#allocation2 + $0x38] sm:$0xf] %vm1612, %v1812
  %1830 = vst.msk [vmem:[#allocation2 + $0x3c] sm:$0xf] %vm1612, %v1814
  %v1831 = vpack.c.bf16 %v1508, %v1507
  %v1832 = vpack.c.bf16 %v1510, %v1509
  %v1833 = vpack.c.bf16 %v1512, %v1511
  %v1834 = vpack.c.bf16 %v1514, %v1513
  %v1839 = vunpack.c.l.b16 %v1831
  %v1840 = vunpack.c.h.b16 %v1831
  %v1841 = vunpack.c.l.b16 %v1832
  %v1842 = vunpack.c.h.b16 %v1832
  %v1843 = vunpack.c.l.b16 %v1833
  %v1844 = vunpack.c.h.b16 %v1833
  %v1845 = vunpack.c.l.b16 %v1834
  %v1846 = vunpack.c.h.b16 %v1834
  %v1847 = vpack.c.b16 %v1839, %v1839
  %v1848 = vpack.c.b16 %v1840, %v1840
  %v1849 = vpack.c.b16 %v1841, %v1841
  %v1850 = vpack.c.b16 %v1842, %v1842
  %v1851 = vpack.c.b16 %v1843, %v1843
  %v1852 = vpack.c.b16 %v1844, %v1844
  %v1853 = vpack.c.b16 %v1845, %v1845
  %v1854 = vpack.c.b16 %v1846, %v1846
  %1855 = vrot.lane.b32.xlu0 %v1847, 64
  %v1856 = vpop.permute.xlu0 %1855
  %1857 = vrot.lane.b32.xlu0 %v1848, 64
  %v1858 = vpop.permute.xlu0 %1857
  %1859 = vrot.lane.b32.xlu0 %v1849, 64
  %v1860 = vpop.permute.xlu0 %1859
  %1861 = vrot.lane.b32.xlu0 %v1850, 64
  %v1862 = vpop.permute.xlu0 %1861
  %1863 = vrot.lane.b32.xlu0 %v1851, 64
  %v1864 = vpop.permute.xlu0 %1863
  %1865 = vrot.lane.b32.xlu0 %v1852, 64
  %v1866 = vpop.permute.xlu0 %1865
  %1867 = vrot.lane.b32.xlu0 %v1853, 64
  %v1868 = vpop.permute.xlu0 %1867
  %1869 = vrot.lane.b32.xlu0 %v1854, 64
  %v1870 = vpop.permute.xlu0 %1869
  %1879 = vst.msk [vmem:[#allocation2 + $0x20] sm:$0xf] %vm1669, %v1856
  %1880 = vst.msk [vmem:[#allocation2 + $0x24] sm:$0xf] %vm1669, %v1858
  %1881 = vst.msk [vmem:[#allocation2 + $0x28] sm:$0xf] %vm1669, %v1860
  %1882 = vst.msk [vmem:[#allocation2 + $0x2c] sm:$0xf] %vm1669, %v1862
  %1883 = vst.msk [vmem:[#allocation2 + $0x30] sm:$0xf] %vm1669, %v1864
  %1884 = vst.msk [vmem:[#allocation2 + $0x34] sm:$0xf] %vm1669, %v1866
  %1885 = vst.msk [vmem:[#allocation2 + $0x38] sm:$0xf] %vm1669, %v1868
  %1886 = vst.msk [vmem:[#allocation2 + $0x3c] sm:$0xf] %vm1669, %v1870
  %v1887 = vpack.c.bf16 %v1516, %v1515
  %v1888 = vpack.c.bf16 %v1518, %v1517
  %v1889 = vpack.c.bf16 %v1520, %v1519
  %v1890 = vpack.c.bf16 %v1522, %v1521
  %v1895 = vunpack.c.l.b16 %v1887
  %v1896 = vunpack.c.h.b16 %v1887
  %v1897 = vunpack.c.l.b16 %v1888
  %v1898 = vunpack.c.h.b16 %v1888
  %v1899 = vunpack.c.l.b16 %v1889
  %v1900 = vunpack.c.h.b16 %v1889
  %v1901 = vunpack.c.l.b16 %v1890
  %v1902 = vunpack.c.h.b16 %v1890
  %v1903 = vpack.c.b16 %v1895, %v1895
  %v1904 = vpack.c.b16 %v1896, %v1896
  %v1905 = vpack.c.b16 %v1897, %v1897
  %v1906 = vpack.c.b16 %v1898, %v1898
  %v1907 = vpack.c.b16 %v1899, %v1899
  %v1908 = vpack.c.b16 %v1900, %v1900
  %v1909 = vpack.c.b16 %v1901, %v1901
  %v1910 = vpack.c.b16 %v1902, %v1902
  %1911 = vrot.lane.b32.xlu0 %v1903, 96
  %v1912 = vpop.permute.xlu0 %1911
  %1913 = vrot.lane.b32.xlu0 %v1904, 96
  %v1914 = vpop.permute.xlu0 %1913
  %1915 = vrot.lane.b32.xlu0 %v1905, 96
  %v1916 = vpop.permute.xlu0 %1915
  %1917 = vrot.lane.b32.xlu0 %v1906, 96
  %v1918 = vpop.permute.xlu0 %1917
  %1919 = vrot.lane.b32.xlu0 %v1907, 96
  %v1920 = vpop.permute.xlu0 %1919
  %1921 = vrot.lane.b32.xlu0 %v1908, 96
  %v1922 = vpop.permute.xlu0 %1921
  %1923 = vrot.lane.b32.xlu0 %v1909, 96
  %v1924 = vpop.permute.xlu0 %1923
  %1925 = vrot.lane.b32.xlu0 %v1910, 96
  %v1926 = vpop.permute.xlu0 %1925
  %1935 = vst.msk [vmem:[#allocation2 + $0x20] sm:$0xf] %vm1726, %v1912
  %1936 = vst.msk [vmem:[#allocation2 + $0x24] sm:$0xf] %vm1726, %v1914
  %1937 = vst.msk [vmem:[#allocation2 + $0x28] sm:$0xf] %vm1726, %v1916
  %1938 = vst.msk [vmem:[#allocation2 + $0x2c] sm:$0xf] %vm1726, %v1918
  %1939 = vst.msk [vmem:[#allocation2 + $0x30] sm:$0xf] %vm1726, %v1920
  %1940 = vst.msk [vmem:[#allocation2 + $0x34] sm:$0xf] %vm1726, %v1922
  %1941 = vst.msk [vmem:[#allocation2 + $0x38] sm:$0xf] %vm1726, %v1924
  %1942 = vst.msk [vmem:[#allocation2 + $0x3c] sm:$0xf] %vm1726, %v1926
  %v1943 = vld [vmem:[#allocation2] sm:$0xf]
  %v1944 = vld [vmem:[#allocation2 + $0x4] sm:$0xf]
  %v1945 = vld [vmem:[#allocation2 + $0x8] sm:$0xf]
  %v1946 = vld [vmem:[#allocation2 + $0xc] sm:$0xf]
  %v1947 = vld [vmem:[#allocation2 + $0x10] sm:$0xf]
  %v1948 = vld [vmem:[#allocation2 + $0x14] sm:$0xf]
  %v1949 = vld [vmem:[#allocation2 + $0x18] sm:$0xf]
  %v1950 = vld [vmem:[#allocation2 + $0x1c] sm:$0xf]
  %v1951 = vld [vmem:[#allocation2 + $0x20] sm:$0xf]
  %v1952 = vld [vmem:[#allocation2 + $0x24] sm:$0xf]
  %v1953 = vld [vmem:[#allocation2 + $0x28] sm:$0xf]
  %v1954 = vld [vmem:[#allocation2 + $0x2c] sm:$0xf]
  %v1955 = vld [vmem:[#allocation2 + $0x30] sm:$0xf]
  %v1956 = vld [vmem:[#allocation2 + $0x34] sm:$0xf]
  %v1957 = vld [vmem:[#allocation2 + $0x38] sm:$0xf]
  %v1958 = vld [vmem:[#allocation2 + $0x3c] sm:$0xf]
  %v1959 = vld [vmem:[%s3] sm:$0xf]
  %v1960 = vld [vmem:[%s3 + $0x4] sm:$0xf]
  %v1961 = vld [vmem:[%s3 + $0x8] sm:$0xf]
  %v1962 = vld [vmem:[%s3 + $0xc] sm:$0xf]
  %v1963 = vld [vmem:[%s3 + $0x10] sm:$0xf]
  %v1964 = vld [vmem:[%s3 + $0x14] sm:$0xf]
  %v1965 = vld [vmem:[%s3 + $0x18] sm:$0xf]
  %v1966 = vld [vmem:[%s3 + $0x1c] sm:$0xf]
  %v1967 = vld [vmem:[%s3 + $0x20] sm:$0xf]
  %v1968 = vld [vmem:[%s3 + $0x24] sm:$0xf]
  %v1969 = vld [vmem:[%s3 + $0x28] sm:$0xf]
  %v1970 = vld [vmem:[%s3 + $0x2c] sm:$0xf]
  %v1971 = vld [vmem:[%s3 + $0x30] sm:$0xf]
  %v1972 = vld [vmem:[%s3 + $0x34] sm:$0xf]
  %v1973 = vld [vmem:[%s3 + $0x38] sm:$0xf]
  %v1974 = vld [vmem:[%s3 + $0x3c] sm:$0xf]
  %v1975 = vld [vmem:[%s4] sm:$0x1]
  %v1977 = vlaneseq
  %v1978 = vshrl.u32 %v1977, 7
  %v1979 = vsub.s32 0, %v1978
  %v1980 = vrot.slane %v1975, %v1979
  %v1998 = vunpack.c.l.b16 %v1943
  %v1999 = vunpack.c.l.b16 %v1944
  %v2000 = vunpack.c.l.b16 %v1945
  %v2001 = vunpack.c.l.b16 %v1946
  %v2002 = vunpack.c.l.b16 %v1947
  %v2003 = vunpack.c.l.b16 %v1948
  %v2004 = vunpack.c.l.b16 %v1949
  %v2005 = vunpack.c.l.b16 %v1950
  %v2006 = vunpack.c.l.b16 %v1951
  %v2007 = vunpack.c.l.b16 %v1952
  %v2008 = vunpack.c.l.b16 %v1953
  %v2009 = vunpack.c.l.b16 %v1954
  %v2010 = vunpack.c.l.b16 %v1955
  %v2011 = vunpack.c.l.b16 %v1956
  %v2012 = vunpack.c.l.b16 %v1957
  %v2013 = vunpack.c.l.b16 %v1958
  %v2014 = vpack.c.b16 %v1999, %v1998
  %v2015 = vpack.c.b16 %v2001, %v2000
  %v2016 = vpack.c.b16 %v2003, %v2002
  %v2017 = vpack.c.b16 %v2005, %v2004
  %v2018 = vpack.c.b16 %v2007, %v2006
  %v2019 = vpack.c.b16 %v2009, %v2008
  %v2020 = vpack.c.b16 %v2011, %v2010
  %v2021 = vpack.c.b16 %v2013, %v2012
  %v2046 = vunpack.c.l.b16 %v1959
  %v2047 = vunpack.c.l.b16 %v1960
  %v2048 = vunpack.c.l.b16 %v1961
  %v2049 = vunpack.c.l.b16 %v1962
  %v2050 = vunpack.c.l.b16 %v1963
  %v2051 = vunpack.c.l.b16 %v1964
  %v2052 = vunpack.c.l.b16 %v1965
  %v2053 = vunpack.c.l.b16 %v1966
  %v2054 = vunpack.c.l.b16 %v1967
  %v2055 = vunpack.c.l.b16 %v1968
  %v2056 = vunpack.c.l.b16 %v1969
  %v2057 = vunpack.c.l.b16 %v1970
  %v2058 = vunpack.c.l.b16 %v1971
  %v2059 = vunpack.c.l.b16 %v1972
  %v2060 = vunpack.c.l.b16 %v1973
  %v2061 = vunpack.c.l.b16 %v1974
  %v2062 = vpack.c.b16 %v2047, %v2046
  %v2063 = vpack.c.b16 %v2049, %v2048
  %v2064 = vpack.c.b16 %v2051, %v2050
  %v2065 = vpack.c.b16 %v2053, %v2052
  %v2066 = vpack.c.b16 %v2055, %v2054
  %v2067 = vpack.c.b16 %v2057, %v2056
  %v2068 = vpack.c.b16 %v2059, %v2058
  %v2069 = vpack.c.b16 %v2061, %v2060
  %2078 = vmatprep.subr.bf16.mxu0 0
  %2079 = vmatpush1.bf16.msra.mxu0 %v2069
  %2080 = vmatprep.subr.bf16.mxu0 0
  %2081 = vmatpush1.bf16.msra.mxu0 %v2068
  %2082 = vmatprep.subr.bf16.mxu0 0
  %2083 = vmatpush1.bf16.msra.mxu0 %v2067
  %2084 = vmatprep.subr.bf16.mxu0 0
  %2085 = vmatpush1.bf16.msra.mxu0 %v2066
  %2086 = vmatprep.subr.bf16.mxu0 0
  %2087 = vmatpush1.bf16.msra.mxu0 %v2065
  %2088 = vmatprep.subr.bf16.mxu0 0
  %2089 = vmatpush1.bf16.msra.mxu0 %v2064
  %2090 = vmatprep.subr.bf16.mxu0 0
  %2091 = vmatpush1.bf16.msra.mxu0 %v2063
  %2092 = vmatprep.subr.bf16.mxu0 0
  %2093 = vmatpush1.bf16.msra.mxu0 %v2062
  %2094 = vmatprep.subr.bf16.mxu0 0
  %2095 = vmatpush2.bf16.msra.mxu0 0
  %2096 = vmatprep.subr.bf16.mxu0 0
  %2097 = vmatpush2.bf16.msra.mxu0 0
  %2098 = vmatprep.subr.bf16.mxu0 0
  %2099 = vmatpush2.bf16.msra.mxu0 0
  %2100 = vmatprep.subr.bf16.mxu0 0
  %2101 = vmatpush2.bf16.msra.mxu0 0
  %2102 = vmatprep.subr.bf16.mxu0 0
  %2103 = vmatpush2.bf16.msra.mxu0 0
  %2104 = vmatprep.subr.bf16.mxu0 0
  %2105 = vmatpush2.bf16.msra.mxu0 0
  %2106 = vmatprep.subr.bf16.mxu0 0
  %2107 = vmatpush2.bf16.msra.mxu0 0
  %2108 = vmatprep.subr.bf16.mxu0 0
  %2109 = vmatpush2.bf16.msra.mxu0 0
  %2110 = vmatprep.mubr.bf16.mxu0 0
  %2111 = vmatmul.mubr.bf16.gmra.mxu0 %v2014
  %v2112 = vpop.f32.mrf.mxu0
  %v2113 = vadd.f32 %v1980, %v2112
  %v2114 = vpop.f32.mrf.mxu0
  %v2115 = vpop.f32.mrf.mxu0
  %v2116 = vadd.f32 %v1980, %v2115
  %v2117 = vpop.f32.mrf.mxu0
  %2118 = vmatprep.mubr.bf16.mxu0 0
  %2119 = vmatmul.mubr.bf16.gmra.mxu0 %v2015
  %v2120 = vpop.f32.mrf.mxu0
  %v2121 = vadd.f32 %v1980, %v2120
  %v2122 = vpop.f32.mrf.mxu0
  %v2123 = vpop.f32.mrf.mxu0
  %v2124 = vadd.f32 %v1980, %v2123
  %v2125 = vpop.f32.mrf.mxu0
  %2126 = vmatprep.mubr.bf16.mxu0 0
  %2127 = vmatmul.mubr.bf16.gmra.mxu0 %v2016
  %v2128 = vpop.f32.mrf.mxu0
  %v2129 = vadd.f32 %v1980, %v2128
  %v2130 = vpop.f32.mrf.mxu0
  %v2131 = vpop.f32.mrf.mxu0
  %v2132 = vadd.f32 %v1980, %v2131
  %v2133 = vpop.f32.mrf.mxu0
  %2134 = vmatprep.mubr.bf16.mxu0 0
  %2135 = vmatmul.mubr.bf16.gmra.mxu0 %v2017
  %v2136 = vpop.f32.mrf.mxu0
  %v2137 = vadd.f32 %v1980, %v2136
  %v2138 = vpop.f32.mrf.mxu0
  %v2139 = vpop.f32.mrf.mxu0
  %v2140 = vadd.f32 %v1980, %v2139
  %v2141 = vpop.f32.mrf.mxu0
  %2142 = vmatprep.mubr.bf16.mxu0 0
  %2143 = vmatmul.mubr.bf16.gmra.mxu0 %v2018
  %v2144 = vpop.f32.mrf.mxu0
  %v2145 = vadd.f32 %v1980, %v2144
  %v2146 = vpop.f32.mrf.mxu0
  %v2147 = vpop.f32.mrf.mxu0
  %v2148 = vadd.f32 %v1980, %v2147
  %v2149 = vpop.f32.mrf.mxu0
  %2150 = vmatprep.mubr.bf16.mxu0 0
  %2151 = vmatmul.mubr.bf16.gmra.mxu0 %v2019
  %v2152 = vpop.f32.mrf.mxu0
  %v2153 = vadd.f32 %v1980, %v2152
  %v2154 = vpop.f32.mrf.mxu0
  %v2155 = vpop.f32.mrf.mxu0
  %v2156 = vadd.f32 %v1980, %v2155
  %v2157 = vpop.f32.mrf.mxu0
  %2158 = vmatprep.mubr.bf16.mxu0 0
  %2159 = vmatmul.mubr.bf16.gmra.mxu0 %v2020
  %v2160 = vpop.f32.mrf.mxu0
  %v2161 = vadd.f32 %v1980, %v2160
  %v2162 = vpop.f32.mrf.mxu0
  %v2163 = vpop.f32.mrf.mxu0
  %v2164 = vadd.f32 %v1980, %v2163
  %v2165 = vpop.f32.mrf.mxu0
  %2166 = vmatprep.mubr.bf16.mxu0 0
  %2167 = vmatmul.mubr.bf16.gmra.mxu0 %v2021
  %v2168 = vpop.f32.mrf.mxu0
  %v2169 = vadd.f32 %v1980, %v2168
  %v2170 = vpop.f32.mrf.mxu0
  %v2171 = vpop.f32.mrf.mxu0
  %v2172 = vadd.f32 %v1980, %v2171
  %v2173 = vpop.f32.mrf.mxu0
  %2174 = vdwg.mxu0
  %vm2175 = vcmask 261120
  %v2176 = vsel %vm2175, %v2113, 0.0
  %v2177 = vsel %vm2175, %v2116, 0.0
  %v2178 = vadd.f32 %v2176, %v2177
  %v2179 = vsel %vm2175, %v2121, 0.0
  %v2180 = vadd.f32 %v2178, %v2179
  %v2181 = vsel %vm2175, %v2124, 0.0
  %v2182 = vadd.f32 %v2180, %v2181
  %v2183 = vsel %vm2175, %v2129, 0.0
  %v2184 = vadd.f32 %v2182, %v2183
  %v2185 = vsel %vm2175, %v2132, 0.0
  %v2186 = vadd.f32 %v2184, %v2185
  %v2187 = vsel %vm2175, %v2137, 0.0
  %v2188 = vadd.f32 %v2186, %v2187
  %v2189 = vsel %vm2175, %v2140, 0.0
  %v2190 = vadd.f32 %v2188, %v2189
  %v2191 = vrot.slane %v2190, 4
  %v2192 = vadd.f32 %v2190, %v2191
  %v2193 = vrot.slane %v2192, 2
  %v2194 = vadd.f32 %v2192, %v2193
  %v2195 = vrot.slane %v2194, 1
  %v2196 = vadd.f32 %v2194, %v2195
  %v2197 = vmul.f32 %v2196, 0.015625
  %v2198 = vsub.f32 %v2113, %v2197
  %v2199 = vsub.f32 %v2116, %v2197
  %v2200 = vsub.f32 %v2121, %v2197
  %v2201 = vsub.f32 %v2124, %v2197
  %v2202 = vsub.f32 %v2129, %v2197
  %v2203 = vsub.f32 %v2132, %v2197
  %v2204 = vsub.f32 %v2137, %v2197
  %v2205 = vsub.f32 %v2140, %v2197
  %v2206 = vmul.f32 %v2198, %v2198
  %v2207 = vmul.f32 %v2199, %v2199
  %v2208 = vmul.f32 %v2200, %v2200
  %v2209 = vmul.f32 %v2201, %v2201
  %v2210 = vmul.f32 %v2202, %v2202
  %v2211 = vmul.f32 %v2203, %v2203
  %v2212 = vmul.f32 %v2204, %v2204
  %v2213 = vmul.f32 %v2205, %v2205
  %v2214 = vsel %vm2175, %v2206, 0.0
  %v2215 = vsel %vm2175, %v2207, 0.0
  %v2216 = vadd.f32 %v2214, %v2215
  %v2217 = vsel %vm2175, %v2208, 0.0
  %v2218 = vadd.f32 %v2216, %v2217
  %v2219 = vsel %vm2175, %v2209, 0.0
  %v2220 = vadd.f32 %v2218, %v2219
  %v2221 = vsel %vm2175, %v2210, 0.0
  %v2222 = vadd.f32 %v2220, %v2221
  %v2223 = vsel %vm2175, %v2211, 0.0
  %v2224 = vadd.f32 %v2222, %v2223
  %v2225 = vsel %vm2175, %v2212, 0.0
  %v2226 = vadd.f32 %v2224, %v2225
  %v2227 = vsel %vm2175, %v2213, 0.0
  %v2228 = vadd.f32 %v2226, %v2227
  %v2229 = vrot.slane %v2228, 4
  %v2230 = vadd.f32 %v2228, %v2229
  %v2231 = vrot.slane %v2230, 2
  %v2232 = vadd.f32 %v2230, %v2231
  %v2233 = vrot.slane %v2232, 1
  %v2234 = vadd.f32 %v2232, %v2233
  %v2235 = vmul.f32 %v2234, 0.015625
  %v2236 = vadd.f32 %v2235, 1e-05
  %v2237 = vrsqrt.pop %v2236
  %v2238 = vmul.f32 %v2198, %v2237
  %v2239 = vmul.f32 %v2199, %v2237
  %v2240 = vmul.f32 %v2200, %v2237
  %v2241 = vmul.f32 %v2201, %v2237
  %v2242 = vmul.f32 %v2202, %v2237
  %v2243 = vmul.f32 %v2203, %v2237
  %v2244 = vmul.f32 %v2204, %v2237
  %v2245 = vmul.f32 %v2205, %v2237
  %vm2246 = vcmp.ge.f32.partialorder %v2238, 0.0
  %vm2247 = vcmp.ge.f32.partialorder %v2239, 0.0
  %vm2248 = vcmp.ge.f32.partialorder %v2240, 0.0
  %vm2249 = vcmp.ge.f32.partialorder %v2241, 0.0
  %vm2250 = vcmp.ge.f32.partialorder %v2242, 0.0
  %vm2251 = vcmp.ge.f32.partialorder %v2243, 0.0
  %vm2252 = vcmp.ge.f32.partialorder %v2244, 0.0
  %vm2253 = vcmp.ge.f32.partialorder %v2245, 0.0
  %v2254 = vmul.f32 %v2238, 0.01
  %v2255 = vmul.f32 %v2239, 0.01
  %v2256 = vmul.f32 %v2240, 0.01
  %v2257 = vmul.f32 %v2241, 0.01
  %v2258 = vmul.f32 %v2242, 0.01
  %v2259 = vmul.f32 %v2243, 0.01
  %v2260 = vmul.f32 %v2244, 0.01
  %v2261 = vmul.f32 %v2245, 0.01
  %v2262 = vsel %vm2246, %v2238, %v2254
  %v2263 = vsel %vm2247, %v2239, %v2255
  %v2264 = vsel %vm2248, %v2240, %v2256
  %v2265 = vsel %vm2249, %v2241, %v2257
  %v2266 = vsel %vm2250, %v2242, %v2258
  %v2267 = vsel %vm2251, %v2243, %v2259
  %v2268 = vsel %vm2252, %v2244, %v2260
  %v2269 = vsel %vm2253, %v2245, %v2261
  %v2270 = vpack.c.bf16 %v2263, %v2262
  %v2271 = vpack.c.bf16 %v2265, %v2264
  %v2272 = vpack.c.bf16 %v2267, %v2266
  %v2273 = vpack.c.bf16 %v2269, %v2268
  %v2275 = vunpack.c.l.b16 %v2270
  %v2276 = vunpack.c.h.b16 %v2270
  %v2277 = vpack.c.b16 %v2275, %v2275
  %v2278 = vpack.c.b16 %v2276, %v2276
  %2281 = vst.msk [vmem:[#allocation3] sm:$0xf] %vm1555, %v2277
  %2282 = vst.msk [vmem:[#allocation3 + $0x4] sm:$0xf] %vm1555, %v2278
  %v2284 = vunpack.c.l.b16 %v2271
  %v2285 = vunpack.c.h.b16 %v2271
  %v2286 = vpack.c.b16 %v2284, %v2284
  %v2287 = vpack.c.b16 %v2285, %v2285
  %2288 = vrot.lane.b32.xlu0 %v2286, 32
  %v2289 = vpop.permute.xlu0 %2288
  %2290 = vrot.lane.b32.xlu0 %v2287, 32
  %v2291 = vpop.permute.xlu0 %2290
  %2294 = vst.msk [vmem:[#allocation3] sm:$0xf] %vm1612, %v2289
  %2295 = vst.msk [vmem:[#allocation3 + $0x4] sm:$0xf] %vm1612, %v2291
  %v2297 = vunpack.c.l.b16 %v2272
  %v2298 = vunpack.c.h.b16 %v2272
  %v2299 = vpack.c.b16 %v2297, %v2297
  %v2300 = vpack.c.b16 %v2298, %v2298
  %2301 = vrot.lane.b32.xlu0 %v2299, 64
  %v2302 = vpop.permute.xlu0 %2301
  %2303 = vrot.lane.b32.xlu0 %v2300, 64
  %v2304 = vpop.permute.xlu0 %2303
  %2307 = vst.msk [vmem:[#allocation3] sm:$0xf] %vm1669, %v2302
  %2308 = vst.msk [vmem:[#allocation3 + $0x4] sm:$0xf] %vm1669, %v2304
  %v2310 = vunpack.c.l.b16 %v2273
  %v2311 = vunpack.c.h.b16 %v2273
  %v2312 = vpack.c.b16 %v2310, %v2310
  %v2313 = vpack.c.b16 %v2311, %v2311
  %2314 = vrot.lane.b32.xlu0 %v2312, 96
  %v2315 = vpop.permute.xlu0 %2314
  %2316 = vrot.lane.b32.xlu0 %v2313, 96
  %v2317 = vpop.permute.xlu0 %2316
  %2320 = vst.msk [vmem:[#allocation3] sm:$0xf] %vm1726, %v2315
  %2321 = vst.msk [vmem:[#allocation3 + $0x4] sm:$0xf] %vm1726, %v2317
  %v2322 = vsel %vm2175, %v2145, 0.0
  %v2323 = vsel %vm2175, %v2148, 0.0
  %v2324 = vadd.f32 %v2322, %v2323
  %v2325 = vsel %vm2175, %v2153, 0.0
  %v2326 = vadd.f32 %v2324, %v2325
  %v2327 = vsel %vm2175, %v2156, 0.0
  %v2328 = vadd.f32 %v2326, %v2327
  %v2329 = vsel %vm2175, %v2161, 0.0
  %v2330 = vadd.f32 %v2328, %v2329
  %v2331 = vsel %vm2175, %v2164, 0.0
  %v2332 = vadd.f32 %v2330, %v2331
  %v2333 = vsel %vm2175, %v2169, 0.0
  %v2334 = vadd.f32 %v2332, %v2333
  %v2335 = vsel %vm2175, %v2172, 0.0
  %v2336 = vadd.f32 %v2334, %v2335
  %v2337 = vrot.slane %v2336, 4
  %v2338 = vadd.f32 %v2336, %v2337
  %v2339 = vrot.slane %v2338, 2
  %v2340 = vadd.f32 %v2338, %v2339
  %v2341 = vrot.slane %v2340, 1
  %v2342 = vadd.f32 %v2340, %v2341
  %v2343 = vmul.f32 %v2342, 0.015625
  %v2344 = vsub.f32 %v2145, %v2343
  %v2345 = vsub.f32 %v2148, %v2343
  %v2346 = vsub.f32 %v2153, %v2343
  %v2347 = vsub.f32 %v2156, %v2343
  %v2348 = vsub.f32 %v2161, %v2343
  %v2349 = vsub.f32 %v2164, %v2343
  %v2350 = vsub.f32 %v2169, %v2343
  %v2351 = vsub.f32 %v2172, %v2343
  %v2352 = vmul.f32 %v2344, %v2344
  %v2353 = vmul.f32 %v2345, %v2345
  %v2354 = vmul.f32 %v2346, %v2346
  %v2355 = vmul.f32 %v2347, %v2347
  %v2356 = vmul.f32 %v2348, %v2348
  %v2357 = vmul.f32 %v2349, %v2349
  %v2358 = vmul.f32 %v2350, %v2350
  %v2359 = vmul.f32 %v2351, %v2351
  %v2360 = vsel %vm2175, %v2352, 0.0
  %v2361 = vsel %vm2175, %v2353, 0.0
  %v2362 = vadd.f32 %v2360, %v2361
  %v2363 = vsel %vm2175, %v2354, 0.0
  %v2364 = vadd.f32 %v2362, %v2363
  %v2365 = vsel %vm2175, %v2355, 0.0
  %v2366 = vadd.f32 %v2364, %v2365
  %v2367 = vsel %vm2175, %v2356, 0.0
  %v2368 = vadd.f32 %v2366, %v2367
  %v2369 = vsel %vm2175, %v2357, 0.0
  %v2370 = vadd.f32 %v2368, %v2369
  %v2371 = vsel %vm2175, %v2358, 0.0
  %v2372 = vadd.f32 %v2370, %v2371
  %v2373 = vsel %vm2175, %v2359, 0.0
  %v2374 = vadd.f32 %v2372, %v2373
  %v2375 = vrot.slane %v2374, 4
  %v2376 = vadd.f32 %v2374, %v2375
  %v2377 = vrot.slane %v2376, 2
  %v2378 = vadd.f32 %v2376, %v2377
  %v2379 = vrot.slane %v2378, 1
  %v2380 = vadd.f32 %v2378, %v2379
  %v2381 = vmul.f32 %v2380, 0.015625
  %v2382 = vadd.f32 %v2381, 1e-05
  %v2383 = vrsqrt.pop %v2382
  %v2384 = vmul.f32 %v2344, %v2383
  %v2385 = vmul.f32 %v2345, %v2383
  %v2386 = vmul.f32 %v2346, %v2383
  %v2387 = vmul.f32 %v2347, %v2383
  %v2388 = vmul.f32 %v2348, %v2383
  %v2389 = vmul.f32 %v2349, %v2383
  %v2390 = vmul.f32 %v2350, %v2383
  %v2391 = vmul.f32 %v2351, %v2383
  %vm2392 = vcmp.ge.f32.partialorder %v2384, 0.0
  %vm2393 = vcmp.ge.f32.partialorder %v2385, 0.0
  %vm2394 = vcmp.ge.f32.partialorder %v2386, 0.0
  %vm2395 = vcmp.ge.f32.partialorder %v2387, 0.0
  %vm2396 = vcmp.ge.f32.partialorder %v2388, 0.0
  %vm2397 = vcmp.ge.f32.partialorder %v2389, 0.0
  %vm2398 = vcmp.ge.f32.partialorder %v2390, 0.0
  %vm2399 = vcmp.ge.f32.partialorder %v2391, 0.0
  %v2400 = vmul.f32 %v2384, 0.01
  %v2401 = vmul.f32 %v2385, 0.01
  %v2402 = vmul.f32 %v2386, 0.01
  %v2403 = vmul.f32 %v2387, 0.01
  %v2404 = vmul.f32 %v2388, 0.01
  %v2405 = vmul.f32 %v2389, 0.01
  %v2406 = vmul.f32 %v2390, 0.01
  %v2407 = vmul.f32 %v2391, 0.01
  %v2408 = vsel %vm2392, %v2384, %v2400
  %v2409 = vsel %vm2393, %v2385, %v2401
  %v2410 = vsel %vm2394, %v2386, %v2402
  %v2411 = vsel %vm2395, %v2387, %v2403
  %v2412 = vsel %vm2396, %v2388, %v2404
  %v2413 = vsel %vm2397, %v2389, %v2405
  %v2414 = vsel %vm2398, %v2390, %v2406
  %v2415 = vsel %vm2399, %v2391, %v2407
  %v2416 = vpack.c.bf16 %v2409, %v2408
  %v2417 = vpack.c.bf16 %v2411, %v2410
  %v2418 = vpack.c.bf16 %v2413, %v2412
  %v2419 = vpack.c.bf16 %v2415, %v2414
  %v2421 = vunpack.c.l.b16 %v2416
  %v2422 = vunpack.c.h.b16 %v2416
  %v2423 = vpack.c.b16 %v2421, %v2421
  %v2424 = vpack.c.b16 %v2422, %v2422
  %2427 = vst.msk [vmem:[#allocation3 + $0x8] sm:$0xf] %vm1555, %v2423
  %2428 = vst.msk [vmem:[#allocation3 + $0xc] sm:$0xf] %vm1555, %v2424
  %v2430 = vunpack.c.l.b16 %v2417
  %v2431 = vunpack.c.h.b16 %v2417
  %v2432 = vpack.c.b16 %v2430, %v2430
  %v2433 = vpack.c.b16 %v2431, %v2431
  %2434 = vrot.lane.b32.xlu0 %v2432, 32
  %v2435 = vpop.permute.xlu0 %2434
  %2436 = vrot.lane.b32.xlu0 %v2433, 32
  %v2437 = vpop.permute.xlu0 %2436
  %2440 = vst.msk [vmem:[#allocation3 + $0x8] sm:$0xf] %vm1612, %v2435
  %2441 = vst.msk [vmem:[#allocation3 + $0xc] sm:$0xf] %vm1612, %v2437
  %v2443 = vunpack.c.l.b16 %v2418
  %v2444 = vunpack.c.h.b16 %v2418
  %v2445 = vpack.c.b16 %v2443, %v2443
  %v2446 = vpack.c.b16 %v2444, %v2444
  %2447 = vrot.lane.b32.xlu0 %v2445, 64
  %v2448 = vpop.permute.xlu0 %2447
  %2449 = vrot.lane.b32.xlu0 %v2446, 64
  %v2450 = vpop.permute.xlu0 %2449
  %2453 = vst.msk [vmem:[#allocation3 + $0x8] sm:$0xf] %vm1669, %v2448
  %2454 = vst.msk [vmem:[#allocation3 + $0xc] sm:$0xf] %vm1669, %v2450
  %v2456 = vunpack.c.l.b16 %v2419
  %v2457 = vunpack.c.h.b16 %v2419
  %v2458 = vpack.c.b16 %v2456, %v2456
  %v2459 = vpack.c.b16 %v2457, %v2457
  %2460 = vrot.lane.b32.xlu0 %v2458, 96
  %v2461 = vpop.permute.xlu0 %2460
  %2462 = vrot.lane.b32.xlu0 %v2459, 96
  %v2463 = vpop.permute.xlu0 %2462
  %2466 = vst.msk [vmem:[#allocation3 + $0x8] sm:$0xf] %vm1726, %v2461
  %2467 = vst.msk [vmem:[#allocation3 + $0xc] sm:$0xf] %vm1726, %v2463
  %v2468 = vld [vmem:[#allocation3] sm:$0xf]
  %v2469 = vld [vmem:[#allocation3 + $0x4] sm:$0xf]
  %v2470 = vld [vmem:[#allocation3 + $0x8] sm:$0xf]
  %v2471 = vld [vmem:[#allocation3 + $0xc] sm:$0xf]
  %v2472 = vld [vmem:[%s5] sm:$0x1]
  %v2473 = vld [vmem:[#allocation4] sm:$0x1]
  %2475 = vset.pattern.permute.xlu0 0
  %2476 = vperm.xlu0 %2475, %v2473
  %v2477 = vpop.permute.xlu0 %2476
  %v2479 = vlaneseq
  %v2480 = vshrl.u32 %v2479, 7
  %v2481 = vsub.s32 0, %v2480
  %v2482 = vrot.slane %v2477, %v2481
  %v2487 = vunpack.c.l.b16 %v2468
  %v2488 = vunpack.c.l.b16 %v2469
  %v2489 = vunpack.c.l.b16 %v2470
  %v2490 = vunpack.c.l.b16 %v2471
  %v2491 = vpack.c.b16 %v2488, %v2487
  %v2492 = vpack.c.b16 %v2490, %v2489
  %2495 = vmatprep.subr.bf16.mxu0 0
  %2496 = vmatpush1.bf16.xpose.msra.mxu0 0
  %2497 = vmatprep.subr.bf16.mxu0 0
  %2498 = vmatpush1.bf16.xpose.msra.mxu0 0
  %2499 = vmatprep.subr.bf16.mxu0 0
  %2500 = vmatpush1.bf16.xpose.msra.mxu0 0
  %2501 = vmatprep.subr.bf16.mxu0 0
  %2502 = vmatpush1.bf16.xpose.msra.mxu0 0
  %2503 = vmatprep.subr.bf16.mxu0 0
  %2504 = vmatpush1.bf16.xpose.msra.mxu0 0
  %2505 = vmatprep.subr.bf16.mxu0 0
  %2506 = vmatpush1.bf16.xpose.msra.mxu0 0
  %2507 = vmatprep.subr.bf16.mxu0 0
  %2508 = vmatpush1.bf16.xpose.msra.mxu0 %v2492
  %2509 = vmatprep.subr.bf16.mxu0 0
  %2510 = vmatpush1.bf16.xpose.msra.mxu0 %v2491
  %2511 = vmatprep.subr.bf16.mxu0 0
  %2512 = vmatpush2.bf16.xpose.msra.mxu0 0
  %2513 = vmatprep.subr.bf16.mxu0 0
  %2514 = vmatpush2.bf16.xpose.msra.mxu0 0
  %2515 = vmatprep.subr.bf16.mxu0 0
  %2516 = vmatpush2.bf16.xpose.msra.mxu0 0
  %2517 = vmatprep.subr.bf16.mxu0 0
  %2518 = vmatpush2.bf16.xpose.msra.mxu0 0
  %2519 = vmatprep.subr.bf16.mxu0 0
  %2520 = vmatpush2.bf16.xpose.msra.mxu0 0
  %2521 = vmatprep.subr.bf16.mxu0 0
  %2522 = vmatpush2.bf16.xpose.msra.mxu0 0
  %2523 = vmatprep.subr.bf16.mxu0 0
  %2524 = vmatpush2.bf16.xpose.msra.mxu0 0
  %2525 = vmatprep.subr.bf16.mxu0 0
  %2526 = vmatpush2.bf16.xpose.msra.mxu0 0
  %2527 = vmatprep.mubr.bf16.mxu0 0
  %2528 = vmatmul.mubr.bf16.gmra.mxu0 %v2472
  %v2529 = vpop.f32.mrf.mxu0
  %v2530 = vadd.f32 %v2482, %v2529
  %v2531 = vpop.f32.mrf.mxu0
  %v2532 = vpop.f32.mrf.mxu0
  %v2533 = vpop.f32.mrf.mxu0
  %2534 = vdwg.mxu0
  %v2535 = vtanh.pop %v2530
  %vm2536 = vcmask 253952
  %2537 = vst.msk [vmem:[%s7] sm:$0x1] %vm2536, %v2535
  // Predicated region
  $region30: #{forward.1} parent=0 // pred_check
    _
  $region31: #{forward.1} parent=0 // pred_check_branch
    %2539 = sbr.rel (0) target = $region33
  $region32: #{forward.1} parent=0 // pred_region
    _
  $region33: #{forward.1} parent=0 // pred_fallthru
    _
  // Predicated region
  $region34: #{forward.1} parent=0 // pred_check
    _
  $region35: #{forward.1} parent=0 // pred_check_branch
    %2541 = sbr.rel (0) target = $region37
  $region36: #{forward.1} parent=0 // pred_region
    _
  $region37: #{forward.1} parent=0 // pred_fallthru
    _

</llo_original>
